<compile_context>
chip_gen: v6e
topology: v6e:2x2x1
jax: 0.10.0
libtpu: 0.0.40
codegen_flags: <defaults>
</compile_context>

<pallas_src>
import functools

import jax
import jax.numpy as jnp
from jax.experimental import pallas as pl
from jax.experimental.pallas import tpu as pltpu

_EPS = 1e-5  # nn.BatchNorm2d default eps


# ----------------------------- in-kernel helpers --------------------------------
def _conv3x3_rows(x_bf16, t_ref, H):
    """3x3 conv (stride 1, zero padding) on lane-dense rows.

    x_bf16: (H, W*Cin) activations (lanes = w*cin).
    t_ref:  (3, W*Cin, W*Cout) per-kh block-Toeplitz weights; kw taps + width padding
            are folded into these matrices, so each kh tap is ONE MXU matmul.
    Height padding: the kh=0 / kh=2 contributions are moved down / up one output row
    with tiny iota-built shift matrices whose zero edge rows supply the zero padding.
    Returns (H, W*Cout) float32.
    """
    c0 = jnp.dot(x_bf16, t_ref[0], preferred_element_type=jnp.float32)
    c1 = jnp.dot(x_bf16, t_ref[1], preferred_element_type=jnp.float32)
    c2 = jnp.dot(x_bf16, t_ref[2], preferred_element_type=jnp.float32)
    r = jax.lax.broadcasted_iota(jnp.int32, (H, H), 0)
    c = jax.lax.broadcasted_iota(jnp.int32, (H, H), 1)
    dn = (r == c + 1).astype(jnp.float32)   # (dn @ c0)[h] = c0[h-1], row 0 -> 0
    up = (r == c - 1).astype(jnp.float32)   # (up @ c2)[h] = c2[h+1], row H-1 -> 0
    return (c1
            + jnp.dot(dn, c0, preferred_element_type=jnp.float32)
            + jnp.dot(up, c2, preferred_element_type=jnp.float32))


# ----------------------------- phase kernels -------------------------------------
def _conv1_kernel(x_ref, t1_ref, b1_ref, y1_ref, ssum_ref, ssq_ref, *, H):
    """conv1 (raw, pre-BN) + partial BN1 stats."""
    xb = x_ref[0].astype(jnp.bfloat16)               # bf16 only at the MXU boundary
    z = _conv3x3_rows(xb, t1_ref, H) + b1_ref[...]   # (H, W*Cout) f32, lane-dense
    y1_ref[0] = z
    # per-tile partial BN1 statistics, per (w, c) lane; folded per-channel in wrapper
    ssum_ref[0] = jnp.sum(z, axis=0, keepdims=True)
    ssq_ref[0] = jnp.sum(z * z, axis=0, keepdims=True)


def _bn1_relu_conv2_kernel(y1_ref, sc1_ref, sh1_ref, t2_ref, b2_ref,
                           y2_ref, ssum_ref, ssq_ref, *, H):
    """folded BN1 + ReLU (lane-dense FMA) + conv2 (raw) + partial BN2 stats."""
    y1 = jnp.maximum(y1_ref[0] * sc1_ref[...] + sh1_ref[...], 0.0)   # (H, W*C)
    z = _conv3x3_rows(y1.astype(jnp.bfloat16), t2_ref, H) + b2_ref[...]
    y2_ref[0] = z
    ssum_ref[0] = jnp.sum(z, axis=0, keepdims=True)
    ssq_ref[0] = jnp.sum(z * z, axis=0, keepdims=True)


def _bn2_skip_add_relu_kernel(*refs, use_1x1conv):
    """folded BN2 + skip path (recomputed in-kernel) + residual add + final ReLU."""
    if use_1x1conv:
        y2_ref, x_ref, t3_ref, b3_ref, sc2_ref, sh2_ref, out_ref = refs
        # 1x1 conv as a single lane-dense matmul (block-diagonal kron(I_W, w3) weight)
        skip = (jnp.dot(x_ref[0].astype(jnp.bfloat16), t3_ref[...],
                        preferred_element_type=jnp.float32) + b3_ref[...])
    else:
        y2_ref, x_ref, sc2_ref, sh2_ref, out_ref = refs
        skip = x_ref[0]                              # identity skip, exact f32
    out_ref[0] = jnp.maximum(
        y2_ref[0] * sc2_ref[...] + sh2_ref[...] + skip, 0.0)


# ----------------------------- wrapper --------------------------------------------
@functools.partial(jax.jit, static_argnames=("use_1x1conv", "strides"))
def residual_forward(x_nchw, params, *, use_1x1conv, strides=1):
    """x_nchw: (N, Cin, H, W) float32 (PyTorch layout). Returns (N, Cout, H, W)."""
    assert strides == 1, "only strides=1 implemented"  # TODO(synk): strided downsampling
    w1, b1, g1, be1, w2, b2, g2, be2, w3, b3 = params
    N, Cin, H, W = x_nchw.shape
    Cout = w1.shape[-1]
    if not use_1x1conv:
        assert Cin == Cout, "identity skip requires input_channels == num_channels"

    WCin, WC = W * Cin, W * Cout

    # lane-dense activations: channels folded onto the 128-lane axis as (w, c)
    x2 = jnp.transpose(x_nchw, (0, 2, 3, 1)).astype(jnp.float32).reshape(N, H, WCin)

    # fold kw taps + width zero-padding of each 3x3 conv into per-kh block-Toeplitz
    # weight matrices (W*Cin, W*Cout); bf16 for the MXU (accumulation stays f32).
    def toeplitz3x3(w_hwio):
        mats = []
        for dh in range(3):
            t = sum(jnp.kron(jnp.eye(W, k=1 - dw, dtype=w_hwio.dtype), w_hwio[dh, dw])
                    for dw in range(3))
            mats.append(t)
        return jnp.stack(mats).astype(jnp.bfloat16)     # (3, W*Cin, W*Cout)

    def tile_c(v):  # per-channel vector -> lane-dense (1, W*C) broadcast row
        return jnp.tile(v, W).reshape(1, W * v.shape[0]).astype(jnp.float32)

    t1, t2 = toeplitz3x3(w1), toeplitz3x3(w2)
    b1_t, b2_t = tile_c(b1), tile_c(b2)

    cparams = pltpu.CompilerParams(
        # per-tile partial stats -> no cross-step state in any kernel, so the grid axis
        # is megacore-shardable ("parallel" -> 2nd TensorCore on v7x). Explicit VMEM
        # limit (v5e default scoped limit is 16 MiB; v7x physical VMEM is 64 MiB).
        dimension_semantics=("parallel",),
        vmem_limit_bytes=32 * 1024 * 1024)

    def full_spec(shape):
        nd = len(shape)
        return pl.BlockSpec(shape, lambda i, _nd=nd: (0,) * _nd)

    def row_spec(last):   # one sample's (H, last) lane-dense band per grid step
        return pl.BlockSpec((1, H, last), lambda i: (i, 0, 0))

    def stat_spec(last):  # per-tile partial-stat row
        return pl.BlockSpec((1, 1, last), lambda i: (i, 0, 0))

    def fold_bn(ssum, ssq, gamma, beta):
        # global per-channel batch stats (training-mode, biased variance) + BN folding
        s = ssum.sum(axis=(0, 1)).reshape(W, Cout).sum(axis=0)
        q = ssq.sum(axis=(0, 1)).reshape(W, Cout).sum(axis=0)
        n = float(N * H * W)
        mean = s / n
        var = q / n - mean * mean
        scale = gamma * jax.lax.rsqrt(var + _EPS)
        shift = beta - mean * scale
        return tile_c(scale), tile_c(shift)

    # ---- phase 1: conv1 (raw) + partial BN1 stats ---------------------------------
    y1_raw, ssum1, ssq1 = pl.pallas_call(
        functools.partial(_conv1_kernel, H=H),
        out_shape=(jax.ShapeDtypeStruct((N, H, WC), jnp.float32),
                   jax.ShapeDtypeStruct((N, 1, WC), jnp.float32),
                   jax.ShapeDtypeStruct((N, 1, WC), jnp.float32)),
        grid=(N,),
        in_specs=[row_spec(WCin), full_spec(t1.shape), full_spec((1, WC))],
        out_specs=(row_spec(WC), stat_spec(WC), stat_spec(WC)),
        compiler_params=cparams,
    )(x2, t1, b1_t)

    sc1, sh1 = fold_bn(ssum1, ssq1, g1, be1)

    # ---- phase 2: BN1 + ReLU + conv2 (raw) + partial BN2 stats --------------------
    y2_raw, ssum2, ssq2 = pl.pallas_call(
        functools.partial(_bn1_relu_conv2_kernel, H=H),
        out_shape=(jax.ShapeDtypeStruct((N, H, WC), jnp.float32),
                   jax.ShapeDtypeStruct((N, 1, WC), jnp.float32),
                   jax.ShapeDtypeStruct((N, 1, WC), jnp.float32)),
        grid=(N,),
        in_specs=[row_spec(WC), full_spec((1, WC)), full_spec((1, WC)),
                  full_spec(t2.shape), full_spec((1, WC))],
        out_specs=(row_spec(WC), stat_spec(WC), stat_spec(WC)),
        compiler_params=cparams,
    )(y1_raw, sc1, sh1, t2, b2_t)

    sc2, sh2 = fold_bn(ssum2, ssq2, g2, be2)

    # ---- phase 3: BN2 + skip (1x1 conv / identity, recomputed) + add + ReLU -------
    k3_in = [y2_raw, x2]
    in_specs3 = [row_spec(WC), row_spec(WCin)]
    if use_1x1conv:
        t3 = jnp.kron(jnp.eye(W, dtype=w3.dtype), w3).astype(jnp.bfloat16)  # (W*Cin, W*Cout)
        k3_in += [t3, tile_c(b3)]               # only DMA'd when actually used
        in_specs3 += [full_spec(t3.shape), full_spec((1, WC))]
    k3_in += [sc2, sh2]
    in_specs3 += [full_spec((1, WC)), full_spec((1, WC))]

    out_ld = pl.pallas_call(
        functools.partial(_bn2_skip_add_relu_kernel, use_1x1conv=use_1x1conv),
        out_shape=jax.ShapeDtypeStruct((N, H, WC), jnp.float32),
        grid=(N,),
        in_specs=in_specs3,
        out_specs=row_spec(WC),
        compiler_params=cparams,
    )(*k3_in)

    return jnp.transpose(out_ld.reshape(N, H, W, Cout), (0, 3, 1, 2))   # back to NCHW


# ----------------------------- deterministic params + pure-JAX reference ----------
def init_params(key, cin, cout):
    ks = jax.random.split(key, 6)
    w1 = jax.random.normal(ks[0], (3, 3, cin, cout), jnp.float32) * 0.1   # HWIO
    b1 = jax.random.normal(ks[1], (cout,), jnp.float32) * 0.1
    w2 = jax.random.normal(ks[2], (3, 3, cout, cout), jnp.float32) * 0.1
    b2 = jax.random.normal(ks[3], (cout,), jnp.float32) * 0.1
    w3 = jax.random.normal(ks[4], (cin, cout), jnp.float32) * 0.1         # 1x1 conv
    b3 = jax.random.normal(ks[5], (cout,), jnp.float32) * 0.1
    g1 = jnp.ones((cout,), jnp.float32)
    be1 = jnp.zeros((cout,), jnp.float32)
    g2 = jnp.ones((cout,), jnp.float32)
    be2 = jnp.zeros((cout,), jnp.float32)
    return (w1, b1, g1, be1, w2, b2, g2, be2, w3, b3)


def ref_residual(x_nhwc, params, *, use_1x1conv):
    w1, b1, g1, be1, w2, b2, g2, be2, w3, b3 = params

    def conv(x, w, b):
        y = jax.lax.conv_general_dilated(
            x, w, window_strides=(1, 1), padding="SAME",
            dimension_numbers=("NHWC", "HWIO", "NHWC"))
        return y + b.reshape(1, 1, 1, -1)

    def bn(y, g, be):
        m = jnp.mean(y, axis=(0, 1, 2), keepdims=True)
        v = jnp.mean((y - m) ** 2, axis=(0, 1, 2), keepdims=True)
        return (y - m) / jnp.sqrt(v + _EPS) * g.reshape(1, 1, 1, -1) + be.reshape(1, 1, 1, -1)

    y = jax.nn.relu(bn(conv(x_nhwc, w1, b1), g1, be1))
    y = bn(conv(y, w2, b2), g2, be2)
    if use_1x1conv:
        skip = jnp.einsum("nhwc,cd->nhwd", x_nhwc, w3) + b3.reshape(1, 1, 1, -1)
    else:
        skip = x_nhwc
    return jax.nn.relu(y + skip)


# ----------------------------- main ------------------------------------------------
if __name__ == "__main__":
    key = jax.random.PRNGKey(0)
    kx, kp1, kp2 = jax.random.split(key, 3)

    # Case 1: use_1x1conv=True, channels 4 -> 8 (all three convs exercised)
    x = jax.random.normal(kx, (2, 4, 16, 16), jnp.float32)   # NCHW, PyTorch convention
    p1 = init_params(kp1, 4, 8)
    out1 = jax.block_until_ready(residual_forward(x, p1, use_1x1conv=True))
    ref1 = jnp.transpose(
        ref_residual(jnp.transpose(x, (0, 2, 3, 1)), p1, use_1x1conv=True), (0, 3, 1, 2))
    assert out1.shape == (2, 8, 16, 16)
    assert bool(jnp.allclose(out1, ref1, atol=3e-2, rtol=3e-2)), "case1 mismatch"

    # Case 2: identity skip (use_1x1conv=False, channels 4 -> 4)
    p2 = init_params(kp2, 4, 4)
    out2 = jax.block_until_ready(residual_forward(x, p2, use_1x1conv=False))
    ref2 = jnp.transpose(
        ref_residual(jnp.transpose(x, (0, 2, 3, 1)), p2, use_1x1conv=False), (0, 3, 1, 2))
    assert out2.shape == (2, 4, 16, 16)
    assert bool(jnp.allclose(out2, ref2, atol=3e-2, rtol=3e-2)), "case2 mismatch"

    print("KERNEL_OK")
</pallas_src>

<mosaic_0001>
module attributes {stable_mosaic.version = 11 : i64} {
  func.func @_conv1_kernel(%arg0: i32, %arg1: memref<1x16x64xf32, #tpu.memory_space<vmem>>, %arg2: memref<3x64x128xbf16, #tpu.memory_space<vmem>>, %arg3: memref<1x128xf32, #tpu.memory_space<vmem>>, %arg4: memref<1x16x128xf32, #tpu.memory_space<vmem>>, %arg5: memref<1x1x128xf32, #tpu.memory_space<vmem>>, %arg6: memref<1x1x128xf32, #tpu.memory_space<vmem>>) attributes {dimension_semantics = [#tpu.dimension_semantics<parallel>], iteration_bounds = array<i64: 2>, scalar_prefetch = 0 : i64, scratch_operands = 0 : i64, tpu.core_type = #tpu.core_type<tc>, window_params = [{transform_indices = @transform_0, window_bounds = array<i64: 1, 16, 64>}, {pipeline_mode = #tpu.pipeline_mode<synchronous>, transform_indices = @transform_1, window_bounds = array<i64: 3, 64, 128>}, {pipeline_mode = #tpu.pipeline_mode<synchronous>, transform_indices = @transform_2, window_bounds = array<i64: 1, 128>}, {transform_indices = @transform_3, window_bounds = array<i64: 1, 16, 128>}, {transform_indices = @transform_4, window_bounds = array<i64: 1, 1, 128>}, {transform_indices = @transform_5, window_bounds = array<i64: 1, 1, 128>}]} {
    %c0 = arith.constant 0 : index
    %c0_0 = arith.constant 0 : index
    %c0_1 = arith.constant 0 : index
    %0 = vector.load %arg1[%c0, %c0_0, %c0_1] : memref<1x16x64xf32, #tpu.memory_space<vmem>>, vector<1x16x64xf32>
    %1 = vector.shape_cast %0 : vector<1x16x64xf32> to vector<16x64xf32>
    %2 = arith.truncf %1 : vector<16x64xf32> to vector<16x64xbf16>
    %c0_2 = arith.constant 0 : index
    %c0_3 = arith.constant 0 : index
    %c0_4 = arith.constant 0 : index
    %3 = vector.load %arg2[%c0_2, %c0_3, %c0_4] : memref<3x64x128xbf16, #tpu.memory_space<vmem>>, vector<1x64x128xbf16>
    %4 = vector.shape_cast %3 : vector<1x64x128xbf16> to vector<64x128xbf16>
    %cst = arith.constant dense<0.000000e+00> : vector<16x128xf32>
    %5 = tpu.matmul %2, %4, %cst {dimension_numbers = #tpu.dot_dimension_numbers<[1], [0], [0], [1], [0, 0, 1, 1], [], []>} : vector<16x64xbf16>, vector<64x128xbf16>, vector<16x128xf32> -> vector<16x128xf32>
    %c1 = arith.constant 1 : index
    %c0_5 = arith.constant 0 : index
    %c0_6 = arith.constant 0 : index
    %6 = vector.load %arg2[%c1, %c0_5, %c0_6] : memref<3x64x128xbf16, #tpu.memory_space<vmem>>, vector<1x64x128xbf16>
    %7 = vector.shape_cast %6 : vector<1x64x128xbf16> to vector<64x128xbf16>
    %cst_7 = arith.constant dense<0.000000e+00> : vector<16x128xf32>
    %8 = tpu.matmul %2, %7, %cst_7 {dimension_numbers = #tpu.dot_dimension_numbers<[1], [0], [0], [1], [0, 0, 1, 1], [], []>} : vector<16x64xbf16>, vector<64x128xbf16>, vector<16x128xf32> -> vector<16x128xf32>
    %c2 = arith.constant 2 : index
    %c0_8 = arith.constant 0 : index
    %c0_9 = arith.constant 0 : index
    %9 = vector.load %arg2[%c2, %c0_8, %c0_9] : memref<3x64x128xbf16, #tpu.memory_space<vmem>>, vector<1x64x128xbf16>
    %10 = vector.shape_cast %9 : vector<1x64x128xbf16> to vector<64x128xbf16>
    %cst_10 = arith.constant dense<0.000000e+00> : vector<16x128xf32>
    %11 = tpu.matmul %2, %10, %cst_10 {dimension_numbers = #tpu.dot_dimension_numbers<[1], [0], [0], [1], [0, 0, 1, 1], [], []>} : vector<16x64xbf16>, vector<64x128xbf16>, vector<16x128xf32> -> vector<16x128xf32>
    %12 = tpu.iota {dimensions = array<i32: 0>} : vector<16x16xi32>
    %13 = tpu.iota {dimensions = array<i32: 1>} : vector<16x16xi32>
    %c1_i32 = arith.constant 1 : i32
    %14 = vector.broadcast %c1_i32 : i32 to vector<16x16xi32>
    %15 = arith.addi %13, %14 : vector<16x16xi32>
    %16 = arith.cmpi eq, %12, %15 : vector<16x16xi32>
    %17 = arith.extui %16 : vector<16x16xi1> to vector<16x16xi32>
    %18 = arith.sitofp %17 : vector<16x16xi32> to vector<16x16xf32>
    %c1_i32_11 = arith.constant 1 : i32
    %19 = vector.broadcast %c1_i32_11 : i32 to vector<16x16xi32>
    %20 = arith.subi %13, %19 : vector<16x16xi32>
    %21 = arith.cmpi eq, %12, %20 : vector<16x16xi32>
    %22 = arith.extui %21 : vector<16x16xi1> to vector<16x16xi32>
    %23 = arith.sitofp %22 : vector<16x16xi32> to vector<16x16xf32>
    %cst_12 = arith.constant dense<0.000000e+00> : vector<16x128xf32>
    %24 = tpu.matmul %18, %5, %cst_12 {dimension_numbers = #tpu.dot_dimension_numbers<[1], [0], [0], [1], [0, 0, 1, 1], [], []>} : vector<16x16xf32>, vector<16x128xf32>, vector<16x128xf32> -> vector<16x128xf32>
    %25 = arith.addf %8, %24 : vector<16x128xf32>
    %cst_13 = arith.constant dense<0.000000e+00> : vector<16x128xf32>
    %26 = tpu.matmul %23, %11, %cst_13 {dimension_numbers = #tpu.dot_dimension_numbers<[1], [0], [0], [1], [0, 0, 1, 1], [], []>} : vector<16x16xf32>, vector<16x128xf32>, vector<16x128xf32> -> vector<16x128xf32>
    %27 = arith.addf %25, %26 : vector<16x128xf32>
    %c0_14 = arith.constant 0 : index
    %c0_15 = arith.constant 0 : index
    %28 = vector.load %arg3[%c0_14, %c0_15] : memref<1x128xf32, #tpu.memory_space<vmem>>, vector<1x128xf32>
    %29 = vector.broadcast %28 : vector<1x128xf32> to vector<16x128xf32>
    %30 = arith.addf %27, %29 : vector<16x128xf32>
    %c0_16 = arith.constant 0 : index
    %c0_17 = arith.constant 0 : index
    %c0_18 = arith.constant 0 : index
    %31 = vector.load %arg4[%c0_16, %c0_17, %c0_18] : memref<1x16x128xf32, #tpu.memory_space<vmem>>, vector<1x16x128xf32>
    %32 = vector.shape_cast %31 : vector<1x16x128xf32> to vector<16x128xf32>
    %33 = vector.shape_cast %30 : vector<16x128xf32> to vector<1x16x128xf32>
    tpu.vector_store %arg4[%c0_16, %c0_17, %c0_18], %33 {strides = array<i32>} : memref<1x16x128xf32, #tpu.memory_space<vmem>>, vector<1x16x128xf32>,
    %cst_19 = arith.constant dense<0.000000e+00> : vector<128xf32>
    %34 = vector.multi_reduction <add>, %30, %cst_19 [0] : vector<16x128xf32> to vector<128xf32>
    %35 = vector.shape_cast %34 : vector<128xf32> to vector<1x128xf32>
    %c0_20 = arith.constant 0 : index
    %c0_21 = arith.constant 0 : index
    %c0_22 = arith.constant 0 : index
    %36 = vector.load %arg5[%c0_20, %c0_21, %c0_22] : memref<1x1x128xf32, #tpu.memory_space<vmem>>, vector<1x1x128xf32>
    %37 = vector.shape_cast %36 : vector<1x1x128xf32> to vector<1x128xf32>
    %38 = vector.shape_cast %35 : vector<1x128xf32> to vector<1x1x128xf32>
    tpu.vector_store %arg5[%c0_20, %c0_21, %c0_22], %38 {strides = array<i32>} : memref<1x1x128xf32, #tpu.memory_space<vmem>>, vector<1x1x128xf32>,
    %39 = arith.mulf %30, %30 : vector<16x128xf32>
    %cst_23 = arith.constant dense<0.000000e+00> : vector<128xf32>
    %40 = vector.multi_reduction <add>, %39, %cst_23 [0] : vector<16x128xf32> to vector<128xf32>
    %41 = vector.shape_cast %40 : vector<128xf32> to vector<1x128xf32>
    %c0_24 = arith.constant 0 : index
    %c0_25 = arith.constant 0 : index
    %c0_26 = arith.constant 0 : index
    %42 = vector.load %arg6[%c0_24, %c0_25, %c0_26] : memref<1x1x128xf32, #tpu.memory_space<vmem>>, vector<1x1x128xf32>
    %43 = vector.shape_cast %42 : vector<1x1x128xf32> to vector<1x128xf32>
    %44 = vector.shape_cast %41 : vector<1x128xf32> to vector<1x1x128xf32>
    tpu.vector_store %arg6[%c0_24, %c0_25, %c0_26], %44 {strides = array<i32>} : memref<1x1x128xf32, #tpu.memory_space<vmem>>, vector<1x1x128xf32>,
    return
  }
  func.func @transform_0(%arg0: i32) -> (i32, i32, i32) {
    %c0_i32 = arith.constant 0 : i32
    %c0_i32_0 = arith.constant 0 : i32
    %c0_i32_1 = arith.constant 0 : i32
    return %arg0, %c0_i32, %c0_i32_0 : i32, i32, i32
  }
  func.func @transform_1(%arg0: i32) -> (i32, i32, i32) {
    %c0_i32 = arith.constant 0 : i32
    %c0_i32_0 = arith.constant 0 : i32
    %c0_i32_1 = arith.constant 0 : i32
    %c0_i32_2 = arith.constant 0 : i32
    return %c0_i32, %c0_i32_0, %c0_i32_1 : i32, i32, i32
  }
  func.func @transform_2(%arg0: i32) -> (i32, i32) {
    %c0_i32 = arith.constant 0 : i32
    %c0_i32_0 = arith.constant 0 : i32
    %c0_i32_1 = arith.constant 0 : i32
    return %c0_i32, %c0_i32_0 : i32, i32
  }
  func.func @transform_3(%arg0: i32) -> (i32, i32, i32) {
    %c0_i32 = arith.constant 0 : i32
    %c0_i32_0 = arith.constant 0 : i32
    %c0_i32_1 = arith.constant 0 : i32
    return %arg0, %c0_i32, %c0_i32_0 : i32, i32, i32
  }
  func.func @transform_4(%arg0: i32) -> (i32, i32, i32) {
    %c0_i32 = arith.constant 0 : i32
    %c0_i32_0 = arith.constant 0 : i32
    %c0_i32_1 = arith.constant 0 : i32
    return %arg0, %c0_i32, %c0_i32_0 : i32, i32, i32
  }
  func.func @transform_5(%arg0: i32) -> (i32, i32, i32) {
    %c0_i32 = arith.constant 0 : i32
    %c0_i32_0 = arith.constant 0 : i32
    %c0_i32_1 = arith.constant 0 : i32
    return %arg0, %c0_i32, %c0_i32_0 : i32, i32, i32
  }
}

module attributes {stable_mosaic.version = 11 : i64} {
  func.func @_bn1_relu_conv2_kernel(%arg0: i32, %arg1: memref<1x16x128xf32, #tpu.memory_space<vmem>>, %arg2: memref<1x128xf32, #tpu.memory_space<vmem>>, %arg3: memref<1x128xf32, #tpu.memory_space<vmem>>, %arg4: memref<3x128x128xbf16, #tpu.memory_space<vmem>>, %arg5: memref<1x128xf32, #tpu.memory_space<vmem>>, %arg6: memref<1x16x128xf32, #tpu.memory_space<vmem>>, %arg7: memref<1x1x128xf32, #tpu.memory_space<vmem>>, %arg8: memref<1x1x128xf32, #tpu.memory_space<vmem>>) attributes {dimension_semantics = [#tpu.dimension_semantics<parallel>], iteration_bounds = array<i64: 2>, scalar_prefetch = 0 : i64, scratch_operands = 0 : i64, tpu.core_type = #tpu.core_type<tc>, window_params = [{transform_indices = @transform_0, window_bounds = array<i64: 1, 16, 128>}, {pipeline_mode = #tpu.pipeline_mode<synchronous>, transform_indices = @transform_1, window_bounds = array<i64: 1, 128>}, {pipeline_mode = #tpu.pipeline_mode<synchronous>, transform_indices = @transform_2, window_bounds = array<i64: 1, 128>}, {pipeline_mode = #tpu.pipeline_mode<synchronous>, transform_indices = @transform_3, window_bounds = array<i64: 3, 128, 128>}, {pipeline_mode = #tpu.pipeline_mode<synchronous>, transform_indices = @transform_4, window_bounds = array<i64: 1, 128>}, {transform_indices = @transform_5, window_bounds = array<i64: 1, 16, 128>}, {transform_indices = @transform_6, window_bounds = array<i64: 1, 1, 128>}, {transform_indices = @transform_7, window_bounds = array<i64: 1, 1, 128>}]} {
    %c0 = arith.constant 0 : index
    %c0_0 = arith.constant 0 : index
    %c0_1 = arith.constant 0 : index
    %0 = vector.load %arg1[%c0, %c0_0, %c0_1] : memref<1x16x128xf32, #tpu.memory_space<vmem>>, vector<1x16x128xf32>
    %1 = vector.shape_cast %0 : vector<1x16x128xf32> to vector<16x128xf32>
    %c0_2 = arith.constant 0 : index
    %c0_3 = arith.constant 0 : index
    %2 = vector.load %arg2[%c0_2, %c0_3] : memref<1x128xf32, #tpu.memory_space<vmem>>, vector<1x128xf32>
    %3 = vector.broadcast %2 : vector<1x128xf32> to vector<16x128xf32>
    %4 = arith.mulf %1, %3 : vector<16x128xf32>
    %c0_4 = arith.constant 0 : index
    %c0_5 = arith.constant 0 : index
    %5 = vector.load %arg3[%c0_4, %c0_5] : memref<1x128xf32, #tpu.memory_space<vmem>>, vector<1x128xf32>
    %6 = vector.broadcast %5 : vector<1x128xf32> to vector<16x128xf32>
    %7 = arith.addf %4, %6 : vector<16x128xf32>
    %cst = arith.constant 0.000000e+00 : f32
    %8 = vector.broadcast %cst : f32 to vector<16x128xf32>
    %9 = arith.maximumf %7, %8 : vector<16x128xf32>
    %10 = arith.truncf %9 : vector<16x128xf32> to vector<16x128xbf16>
    %c0_6 = arith.constant 0 : index
    %c0_7 = arith.constant 0 : index
    %c0_8 = arith.constant 0 : index
    %11 = vector.load %arg4[%c0_6, %c0_7, %c0_8] : memref<3x128x128xbf16, #tpu.memory_space<vmem>>, vector<1x128x128xbf16>
    %12 = vector.shape_cast %11 : vector<1x128x128xbf16> to vector<128x128xbf16>
    %cst_9 = arith.constant dense<0.000000e+00> : vector<16x128xf32>
    %13 = tpu.matmul %10, %12, %cst_9 {dimension_numbers = #tpu.dot_dimension_numbers<[1], [0], [0], [1], [0, 0, 1, 1], [], []>} : vector<16x128xbf16>, vector<128x128xbf16>, vector<16x128xf32> -> vector<16x128xf32>
    %c1 = arith.constant 1 : index
    %c0_10 = arith.constant 0 : index
    %c0_11 = arith.constant 0 : index
    %14 = vector.load %arg4[%c1, %c0_10, %c0_11] : memref<3x128x128xbf16, #tpu.memory_space<vmem>>, vector<1x128x128xbf16>
    %15 = vector.shape_cast %14 : vector<1x128x128xbf16> to vector<128x128xbf16>
    %cst_12 = arith.constant dense<0.000000e+00> : vector<16x128xf32>
    %16 = tpu.matmul %10, %15, %cst_12 {dimension_numbers = #tpu.dot_dimension_numbers<[1], [0], [0], [1], [0, 0, 1, 1], [], []>} : vector<16x128xbf16>, vector<128x128xbf16>, vector<16x128xf32> -> vector<16x128xf32>
    %c2 = arith.constant 2 : index
    %c0_13 = arith.constant 0 : index
    %c0_14 = arith.constant 0 : index
    %17 = vector.load %arg4[%c2, %c0_13, %c0_14] : memref<3x128x128xbf16, #tpu.memory_space<vmem>>, vector<1x128x128xbf16>
    %18 = vector.shape_cast %17 : vector<1x128x128xbf16> to vector<128x128xbf16>
    %cst_15 = arith.constant dense<0.000000e+00> : vector<16x128xf32>
    %19 = tpu.matmul %10, %18, %cst_15 {dimension_numbers = #tpu.dot_dimension_numbers<[1], [0], [0], [1], [0, 0, 1, 1], [], []>} : vector<16x128xbf16>, vector<128x128xbf16>, vector<16x128xf32> -> vector<16x128xf32>
    %20 = tpu.iota {dimensions = array<i32: 0>} : vector<16x16xi32>
    %21 = tpu.iota {dimensions = array<i32: 1>} : vector<16x16xi32>
    %c1_i32 = arith.constant 1 : i32
    %22 = vector.broadcast %c1_i32 : i32 to vector<16x16xi32>
    %23 = arith.addi %21, %22 : vector<16x16xi32>
    %24 = arith.cmpi eq, %20, %23 : vector<16x16xi32>
    %25 = arith.extui %24 : vector<16x16xi1> to vector<16x16xi32>
    %26 = arith.sitofp %25 : vector<16x16xi32> to vector<16x16xf32>
    %c1_i32_16 = arith.constant 1 : i32
    %27 = vector.broadcast %c1_i32_16 : i32 to vector<16x16xi32>
    %28 = arith.subi %21, %27 : vector<16x16xi32>
    %29 = arith.cmpi eq, %20, %28 : vector<16x16xi32>
    %30 = arith.extui %29 : vector<16x16xi1> to vector<16x16xi32>
    %31 = arith.sitofp %30 : vector<16x16xi32> to vector<16x16xf32>
    %cst_17 = arith.constant dense<0.000000e+00> : vector<16x128xf32>
    %32 = tpu.matmul %26, %13, %cst_17 {dimension_numbers = #tpu.dot_dimension_numbers<[1], [0], [0], [1], [0, 0, 1, 1], [], []>} : vector<16x16xf32>, vector<16x128xf32>, vector<16x128xf32> -> vector<16x128xf32>
    %33 = arith.addf %16, %32 : vector<16x128xf32>
    %cst_18 = arith.constant dense<0.000000e+00> : vector<16x128xf32>
    %34 = tpu.matmul %31, %19, %cst_18 {dimension_numbers = #tpu.dot_dimension_numbers<[1], [0], [0], [1], [0, 0, 1, 1], [], []>} : vector<16x16xf32>, vector<16x128xf32>, vector<16x128xf32> -> vector<16x128xf32>
    %35 = arith.addf %33, %34 : vector<16x128xf32>
    %c0_19 = arith.constant 0 : index
    %c0_20 = arith.constant 0 : index
    %36 = vector.load %arg5[%c0_19, %c0_20] : memref<1x128xf32, #tpu.memory_space<vmem>>, vector<1x128xf32>
    %37 = vector.broadcast %36 : vector<1x128xf32> to vector<16x128xf32>
    %38 = arith.addf %35, %37 : vector<16x128xf32>
    %c0_21 = arith.constant 0 : index
    %c0_22 = arith.constant 0 : index
    %c0_23 = arith.constant 0 : index
    %39 = vector.load %arg6[%c0_21, %c0_22, %c0_23] : memref<1x16x128xf32, #tpu.memory_space<vmem>>, vector<1x16x128xf32>
    %40 = vector.shape_cast %39 : vector<1x16x128xf32> to vector<16x128xf32>
    %41 = vector.shape_cast %38 : vector<16x128xf32> to vector<1x16x128xf32>
    tpu.vector_store %arg6[%c0_21, %c0_22, %c0_23], %41 {strides = array<i32>} : memref<1x16x128xf32, #tpu.memory_space<vmem>>, vector<1x16x128xf32>,
    %cst_24 = arith.constant dense<0.000000e+00> : vector<128xf32>
    %42 = vector.multi_reduction <add>, %38, %cst_24 [0] : vector<16x128xf32> to vector<128xf32>
    %43 = vector.shape_cast %42 : vector<128xf32> to vector<1x128xf32>
    %c0_25 = arith.constant 0 : index
    %c0_26 = arith.constant 0 : index
    %c0_27 = arith.constant 0 : index
    %44 = vector.load %arg7[%c0_25, %c0_26, %c0_27] : memref<1x1x128xf32, #tpu.memory_space<vmem>>, vector<1x1x128xf32>
    %45 = vector.shape_cast %44 : vector<1x1x128xf32> to vector<1x128xf32>
    %46 = vector.shape_cast %43 : vector<1x128xf32> to vector<1x1x128xf32>
    tpu.vector_store %arg7[%c0_25, %c0_26, %c0_27], %46 {strides = array<i32>} : memref<1x1x128xf32, #tpu.memory_space<vmem>>, vector<1x1x128xf32>,
    %47 = arith.mulf %38, %38 : vector<16x128xf32>
    %cst_28 = arith.constant dense<0.000000e+00> : vector<128xf32>
    %48 = vector.multi_reduction <add>, %47, %cst_28 [0] : vector<16x128xf32> to vector<128xf32>
    %49 = vector.shape_cast %48 : vector<128xf32> to vector<1x128xf32>
    %c0_29 = arith.constant 0 : index
    %c0_30 = arith.constant 0 : index
    %c0_31 = arith.constant 0 : index
    %50 = vector.load %arg8[%c0_29, %c0_30, %c0_31] : memref<1x1x128xf32, #tpu.memory_space<vmem>>, vector<1x1x128xf32>
    %51 = vector.shape_cast %50 : vector<1x1x128xf32> to vector<1x128xf32>
    %52 = vector.shape_cast %49 : vector<1x128xf32> to vector<1x1x128xf32>
    tpu.vector_store %arg8[%c0_29, %c0_30, %c0_31], %52 {strides = array<i32>} : memref<1x1x128xf32, #tpu.memory_space<vmem>>, vector<1x1x128xf32>,
    return
  }
  func.func @transform_0(%arg0: i32) -> (i32, i32, i32) {
    %c0_i32 = arith.constant 0 : i32
    %c0_i32_0 = arith.constant 0 : i32
    %c0_i32_1 = arith.constant 0 : i32
    return %arg0, %c0_i32, %c0_i32_0 : i32, i32, i32
  }
  func.func @transform_1(%arg0: i32) -> (i32, i32) {
    %c0_i32 = arith.constant 0 : i32
    %c0_i32_0 = arith.constant 0 : i32
    %c0_i32_1 = arith.constant 0 : i32
    return %c0_i32, %c0_i32_0 : i32, i32
  }
  func.func @transform_2(%arg0: i32) -> (i32, i32) {
    %c0_i32 = arith.constant 0 : i32
    %c0_i32_0 = arith.constant 0 : i32
    %c0_i32_1 = arith.constant 0 : i32
    return %c0_i32, %c0_i32_0 : i32, i32
  }
  func.func @transform_3(%arg0: i32) -> (i32, i32, i32) {
    %c0_i32 = arith.constant 0 : i32
    %c0_i32_0 = arith.constant 0 : i32
    %c0_i32_1 = arith.constant 0 : i32
    %c0_i32_2 = arith.constant 0 : i32
    return %c0_i32, %c0_i32_0, %c0_i32_1 : i32, i32, i32
  }
  func.func @transform_4(%arg0: i32) -> (i32, i32) {
    %c0_i32 = arith.constant 0 : i32
    %c0_i32_0 = arith.constant 0 : i32
    %c0_i32_1 = arith.constant 0 : i32
    return %c0_i32, %c0_i32_0 : i32, i32
  }
  func.func @transform_5(%arg0: i32) -> (i32, i32, i32) {
    %c0_i32 = arith.constant 0 : i32
    %c0_i32_0 = arith.constant 0 : i32
    %c0_i32_1 = arith.constant 0 : i32
    return %arg0, %c0_i32, %c0_i32_0 : i32, i32, i32
  }
  func.func @transform_6(%arg0: i32) -> (i32, i32, i32) {
    %c0_i32 = arith.constant 0 : i32
    %c0_i32_0 = arith.constant 0 : i32
    %c0_i32_1 = arith.constant 0 : i32
    return %arg0, %c0_i32, %c0_i32_0 : i32, i32, i32
  }
  func.func @transform_7(%arg0: i32) -> (i32, i32, i32) {
    %c0_i32 = arith.constant 0 : i32
    %c0_i32_0 = arith.constant 0 : i32
    %c0_i32_1 = arith.constant 0 : i32
    return %arg0, %c0_i32, %c0_i32_0 : i32, i32, i32
  }
}

module attributes {stable_mosaic.version = 11 : i64} {
  func.func @_bn2_skip_add_relu_kernel(%arg0: i32, %arg1: memref<1x16x128xf32, #tpu.memory_space<vmem>>, %arg2: memref<1x16x64xf32, #tpu.memory_space<vmem>>, %arg3: memref<64x128xbf16, #tpu.memory_space<vmem>>, %arg4: memref<1x128xf32, #tpu.memory_space<vmem>>, %arg5: memref<1x128xf32, #tpu.memory_space<vmem>>, %arg6: memref<1x128xf32, #tpu.memory_space<vmem>>, %arg7: memref<1x16x128xf32, #tpu.memory_space<vmem>>) attributes {dimension_semantics = [#tpu.dimension_semantics<parallel>], iteration_bounds = array<i64: 2>, scalar_prefetch = 0 : i64, scratch_operands = 0 : i64, tpu.core_type = #tpu.core_type<tc>, window_params = [{transform_indices = @transform_0, window_bounds = array<i64: 1, 16, 128>}, {transform_indices = @transform_1, window_bounds = array<i64: 1, 16, 64>}, {pipeline_mode = #tpu.pipeline_mode<synchronous>, transform_indices = @transform_2, window_bounds = array<i64: 64, 128>}, {pipeline_mode = #tpu.pipeline_mode<synchronous>, transform_indices = @transform_3, window_bounds = array<i64: 1, 128>}, {pipeline_mode = #tpu.pipeline_mode<synchronous>, transform_indices = @transform_4, window_bounds = array<i64: 1, 128>}, {pipeline_mode = #tpu.pipeline_mode<synchronous>, transform_indices = @transform_5, window_bounds = array<i64: 1, 128>}, {transform_indices = @transform_6, window_bounds = array<i64: 1, 16, 128>}]} {
    %c0 = arith.constant 0 : index
    %c0_0 = arith.constant 0 : index
    %c0_1 = arith.constant 0 : index
    %0 = vector.load %arg2[%c0, %c0_0, %c0_1] : memref<1x16x64xf32, #tpu.memory_space<vmem>>, vector<1x16x64xf32>
    %1 = vector.shape_cast %0 : vector<1x16x64xf32> to vector<16x64xf32>
    %2 = arith.truncf %1 : vector<16x64xf32> to vector<16x64xbf16>
    %c0_2 = arith.constant 0 : index
    %c0_3 = arith.constant 0 : index
    %3 = vector.load %arg3[%c0_2, %c0_3] : memref<64x128xbf16, #tpu.memory_space<vmem>>, vector<64x128xbf16>
    %cst = arith.constant dense<0.000000e+00> : vector<16x128xf32>
    %4 = tpu.matmul %2, %3, %cst {dimension_numbers = #tpu.dot_dimension_numbers<[1], [0], [0], [1], [0, 0, 1, 1], [], []>} : vector<16x64xbf16>, vector<64x128xbf16>, vector<16x128xf32> -> vector<16x128xf32>
    %c0_4 = arith.constant 0 : index
    %c0_5 = arith.constant 0 : index
    %5 = vector.load %arg4[%c0_4, %c0_5] : memref<1x128xf32, #tpu.memory_space<vmem>>, vector<1x128xf32>
    %6 = vector.broadcast %5 : vector<1x128xf32> to vector<16x128xf32>
    %7 = arith.addf %4, %6 : vector<16x128xf32>
    %c0_6 = arith.constant 0 : index
    %c0_7 = arith.constant 0 : index
    %c0_8 = arith.constant 0 : index
    %8 = vector.load %arg1[%c0_6, %c0_7, %c0_8] : memref<1x16x128xf32, #tpu.memory_space<vmem>>, vector<1x16x128xf32>
    %9 = vector.shape_cast %8 : vector<1x16x128xf32> to vector<16x128xf32>
    %c0_9 = arith.constant 0 : index
    %c0_10 = arith.constant 0 : index
    %10 = vector.load %arg5[%c0_9, %c0_10] : memref<1x128xf32, #tpu.memory_space<vmem>>, vector<1x128xf32>
    %11 = vector.broadcast %10 : vector<1x128xf32> to vector<16x128xf32>
    %12 = arith.mulf %9, %11 : vector<16x128xf32>
    %c0_11 = arith.constant 0 : index
    %c0_12 = arith.constant 0 : index
    %13 = vector.load %arg6[%c0_11, %c0_12] : memref<1x128xf32, #tpu.memory_space<vmem>>, vector<1x128xf32>
    %14 = vector.broadcast %13 : vector<1x128xf32> to vector<16x128xf32>
    %15 = arith.addf %12, %14 : vector<16x128xf32>
    %16 = arith.addf %15, %7 : vector<16x128xf32>
    %cst_13 = arith.constant 0.000000e+00 : f32
    %17 = vector.broadcast %cst_13 : f32 to vector<16x128xf32>
    %18 = arith.maximumf %16, %17 : vector<16x128xf32>
    %c0_14 = arith.constant 0 : index
    %c0_15 = arith.constant 0 : index
    %c0_16 = arith.constant 0 : index
    %19 = vector.load %arg7[%c0_14, %c0_15, %c0_16] : memref<1x16x128xf32, #tpu.memory_space<vmem>>, vector<1x16x128xf32>
    %20 = vector.shape_cast %19 : vector<1x16x128xf32> to vector<16x128xf32>
    %21 = vector.shape_cast %18 : vector<16x128xf32> to vector<1x16x128xf32>
    tpu.vector_store %arg7[%c0_14, %c0_15, %c0_16], %21 {strides = array<i32>} : memref<1x16x128xf32, #tpu.memory_space<vmem>>, vector<1x16x128xf32>,
    return
  }
  func.func @transform_0(%arg0: i32) -> (i32, i32, i32) {
    %c0_i32 = arith.constant 0 : i32
    %c0_i32_0 = arith.constant 0 : i32
    %c0_i32_1 = arith.constant 0 : i32
    return %arg0, %c0_i32, %c0_i32_0 : i32, i32, i32
  }
  func.func @transform_1(%arg0: i32) -> (i32, i32, i32) {
    %c0_i32 = arith.constant 0 : i32
    %c0_i32_0 = arith.constant 0 : i32
    %c0_i32_1 = arith.constant 0 : i32
    return %arg0, %c0_i32, %c0_i32_0 : i32, i32, i32
  }
  func.func @transform_2(%arg0: i32) -> (i32, i32) {
    %c0_i32 = arith.constant 0 : i32
    %c0_i32_0 = arith.constant 0 : i32
    %c0_i32_1 = arith.constant 0 : i32
    return %c0_i32, %c0_i32_0 : i32, i32
  }
  func.func @transform_3(%arg0: i32) -> (i32, i32) {
    %c0_i32 = arith.constant 0 : i32
    %c0_i32_0 = arith.constant 0 : i32
    %c0_i32_1 = arith.constant 0 : i32
    return %c0_i32, %c0_i32_0 : i32, i32
  }
  func.func @transform_4(%arg0: i32) -> (i32, i32) {
    %c0_i32 = arith.constant 0 : i32
    %c0_i32_0 = arith.constant 0 : i32
    %c0_i32_1 = arith.constant 0 : i32
    return %c0_i32, %c0_i32_0 : i32, i32
  }
  func.func @transform_5(%arg0: i32) -> (i32, i32) {
    %c0_i32 = arith.constant 0 : i32
    %c0_i32_0 = arith.constant 0 : i32
    %c0_i32_1 = arith.constant 0 : i32
    return %c0_i32, %c0_i32_0 : i32, i32
  }
  func.func @transform_6(%arg0: i32) -> (i32, i32, i32) {
    %c0_i32 = arith.constant 0 : i32
    %c0_i32_0 = arith.constant 0 : i32
    %c0_i32_1 = arith.constant 0 : i32
    return %arg0, %c0_i32, %c0_i32_0 : i32, i32, i32
  }
}

</mosaic_0001>

<llo_original>
// kernel: tile.38
$region0: #{tile.38}
  #allocation0 [shape = 's32[1]{0}', space=sflag, size = 0x4, scoped, tag = 'scoped memory for tile.38']
  %s0 = inlined_call_operand.vmem [shape: f32[8], index: 0, kind: input, shape index: {}]
  %s1 = inlined_call_operand.vmem [shape: f32[16,8], index: 1, kind: output, shape index: {}]
  // Predicated region
  $region2: #{tile.38} parent=0 // pred_check
    _
  $region3: #{tile.38} parent=0 // pred_check_branch
    %3 = sbr.rel (0) target = $region5
  $region4: #{tile.38} parent=0 // pred_region
    _
  $region5: #{tile.38} parent=0 // pred_fallthru
    _
  %v4 = vld [vmem:[%s0] ss:$0 sm:$0xff]
  %5 = vst [vmem:[%s1] sm:$0xff] %v4
  %s6 = scalar_lea.vmem %s1, 8
  %7 = vst [vmem:[%s6] sm:$0xff] %v4

// kernel: tile.39
$region0: #{tile.39}
  %s0 = inlined_call_operand.vmem [shape: f32[16,8], index: 0, kind: input, shape index: {}]
  %s1 = inlined_call_operand.vmem [shape: f32[1,128], index: 1, kind: output, shape index: {}]
  $region1: #{tile.39} parent=0
    #allocation0 [shape = 'u8[4096]{0}', space=vmem, size = 0x1000, scoped, tag = 'scoped mem for output reshape']
    %v2 = vld [vmem:[%s0] sm:$0x1]
    %vm3 = vcmask 64512
    %4 = vst.msk [vmem:[#allocation0] sm:$0x1] %vm3, %v2
    %s5 = scalar_lea.vmem %s0, 15
    %v6 = vld [vmem:[%s5] sm:$0x1]
    %7 = vrot.lane.b32.xlu0 %v6, 120
    %v8 = vpop.permute.xlu0 %7
    %vm9 = vcmask 1048512
    %10 = vst.msk [vmem:[#allocation0] sm:$0x1] %vm9, %v8
    %s11 = scalar_lea.vmem %s0, 14
    %v12 = vld [vmem:[%s11] sm:$0x1]
    %13 = vrot.lane.b32.xlu0 %v12, 112
    %v14 = vpop.permute.xlu0 %13
    %vm15 = vcmask 982912
    %16 = vst.msk [vmem:[#allocation0] sm:$0x1] %vm15, %v14
    %s17 = scalar_lea.vmem %s0, 13
    %v18 = vld [vmem:[%s17] sm:$0x1]
    %19 = vrot.lane.b32.xlu0 %v18, 104
    %v20 = vpop.permute.xlu0 %19
    %vm21 = vcmask 917312
    %22 = vst.msk [vmem:[#allocation0] sm:$0x1] %vm21, %v20
    %s23 = scalar_lea.vmem %s0, 12
    %v24 = vld [vmem:[%s23] sm:$0x1]
    %25 = vrot.lane.b32.xlu0 %v24, 96
    %v26 = vpop.permute.xlu0 %25
    %vm27 = vcmask 851712
    %28 = vst.msk [vmem:[#allocation0] sm:$0x1] %vm27, %v26
    %s29 = scalar_lea.vmem %s0, 11
    %v30 = vld [vmem:[%s29] sm:$0x1]
    %31 = vrot.lane.b32.xlu0 %v30, 88
    %v32 = vpop.permute.xlu0 %31
    %vm33 = vcmask 786112
    %34 = vst.msk [vmem:[#allocation0] sm:$0x1] %vm33, %v32
    %s35 = scalar_lea.vmem %s0, 10
    %v36 = vld [vmem:[%s35] sm:$0x1]
    %37 = vrot.lane.b32.xlu0 %v36, 80
    %v38 = vpop.permute.xlu0 %37
    %vm39 = vcmask 720512
    %40 = vst.msk [vmem:[#allocation0] sm:$0x1] %vm39, %v38
    %s41 = scalar_lea.vmem %s0, 9
    %v42 = vld [vmem:[%s41] sm:$0x1]
    %43 = vrot.lane.b32.xlu0 %v42, 72
    %v44 = vpop.permute.xlu0 %43
    %vm45 = vcmask 654912
    %46 = vst.msk [vmem:[#allocation0] sm:$0x1] %vm45, %v44
    %s47 = scalar_lea.vmem %s0, 8
    %v48 = vld [vmem:[%s47] sm:$0x1]
    %49 = vrot.lane.b32.xlu0 %v48, 64
    %v50 = vpop.permute.xlu0 %49
    %vm51 = vcmask 589312
    %52 = vst.msk [vmem:[#allocation0] sm:$0x1] %vm51, %v50
    %s53 = scalar_lea.vmem %s0, 7
    %v54 = vld [vmem:[%s53] sm:$0x1]
    %55 = vrot.lane.b32.xlu0 %v54, 56
    %v56 = vpop.permute.xlu0 %55
    %vm57 = vcmask 523712
    %58 = vst.msk [vmem:[#allocation0] sm:$0x1] %vm57, %v56
    %s59 = scalar_lea.vmem %s0, 6
    %v60 = vld [vmem:[%s59] sm:$0x1]
    %61 = vrot.lane.b32.xlu0 %v60, 48
    %v62 = vpop.permute.xlu0 %61
    %vm63 = vcmask 458112
    %64 = vst.msk [vmem:[#allocation0] sm:$0x1] %vm63, %v62
    %s65 = scalar_lea.vmem %s0, 5
    %v66 = vld [vmem:[%s65] sm:$0x1]
    %67 = vrot.lane.b32.xlu0 %v66, 40
    %v68 = vpop.permute.xlu0 %67
    %vm69 = vcmask 392512
    %70 = vst.msk [vmem:[#allocation0] sm:$0x1] %vm69, %v68
    %s71 = scalar_lea.vmem %s0, 4
    %v72 = vld [vmem:[%s71] sm:$0x1]
    %73 = vrot.lane.b32.xlu0 %v72, 32
    %v74 = vpop.permute.xlu0 %73
    %vm75 = vcmask 326912
    %76 = vst.msk [vmem:[#allocation0] sm:$0x1] %vm75, %v74
    %s77 = scalar_lea.vmem %s0, 3
    %v78 = vld [vmem:[%s77] sm:$0x1]
    %79 = vrot.lane.b32.xlu0 %v78, 24
    %v80 = vpop.permute.xlu0 %79
    %vm81 = vcmask 261312
    %82 = vst.msk [vmem:[#allocation0] sm:$0x1] %vm81, %v80
    %s83 = scalar_lea.vmem %s0, 2
    %v84 = vld [vmem:[%s83] sm:$0x1]
    %85 = vrot.lane.b32.xlu0 %v84, 16
    %v86 = vpop.permute.xlu0 %85
    %vm87 = vcmask 195712
    %88 = vst.msk [vmem:[#allocation0] sm:$0x1] %vm87, %v86
    %s89 = scalar_lea.vmem %s0, 1
    %v90 = vld [vmem:[%s89] sm:$0x1]
    %91 = vrot.lane.b32.xlu0 %v90, 8
    %v92 = vpop.permute.xlu0 %91
    %vm93 = vcmask 130112
    %94 = vst.msk [vmem:[#allocation0] sm:$0x1] %vm93, %v92
    %s96 = sshll.u32 1, 1
    %s97 = ssub.s32 %s96, 1
    %v99 = vld [vmem:[#allocation0] sm:%s97]
    %s100 = sshll.u32 1, 1
    %s101 = ssub.s32 %s100, 1
    %102 = vst [vmem:[%s1] sm:%s101] %v99

// kernel: residual_forward.3
$region0: #{residual_forward.3}
  #allocation0 [shape = 'u32[]', space=smem, size = 0x4, offset = 0x4, fixed_abs, tag = 'smem constant byte address 0x4 - core index']
  #allocation1 [shape = 'u32[144,128]{1,0:T(1,128)}', space=vmem, size = 0x12000, scoped, tag = 'internal scratch']
  %s0 = inlined_call_operand.vmem [shape: f32[2,16,64], index: 0, kind: input, shape index: {}]
  %s1 = inlined_call_operand.vmem [shape: bf16[3,64,128], index: 1, kind: input, shape index: {}]
  %s2 = inlined_call_operand.vmem [shape: f32[1,128], index: 2, kind: input, shape index: {}]
  %s3 = inlined_call_operand.vmem [shape: f32[2,16,128], index: 3, kind: output, shape index: {0}]
  %s4 = inlined_call_operand.vmem [shape: f32[2,1,128], index: 4, kind: output, shape index: {1}]
  %s5 = inlined_call_operand.vmem [shape: f32[2,1,128], index: 5, kind: output, shape index: {2}]
  %6 = xla_tuple %s3, %s4, %s5
  %s7 = sld [smem:[#allocation0]]
  $region61: #{residual_forward.3} parent=0
    _
  %s9 = ssub.s32 1, %s7
  %s10 = scalar_select 0, %s9, %s7
  loop: start=0, step=1, limit=4
  $region2: #{residual_forward.3} parent=0 // loop_pre_header
    _
  $region3: #{residual_forward.3} parent=0 // loop_header
    %s12 = sphi 0, %s16
    %p13 = scmp.ge.s32.totalorder %s12, 4
    %s22 = sphi 0, %s24
    %s25 = sphi 0, %s22
    %s26 = sphi 0, %s25
    %s42 = sphi 0, %s26
    %s46 = sphi 0, %s46
    %s48 = sphi 0, %s46
    %s49 = sphi 0, %s48
    %s63 = sphi 0, %s49
    %s67 = sphi 0, %s67
    %s69 = sphi 0, %s67
    %s70 = sphi 0, %s69
    %s84 = sphi 0, %s70
    %s90 = sphi 0, %s92
    %s93 = sphi 0, %s90
    %s94 = sphi 0, %s93
    %s110 = sphi 0, %s94
    %s116 = sphi 0, %s118
    %s119 = sphi 0, %s116
    %s120 = sphi 0, %s119
    %s136 = sphi 0, %s120
    %s142 = sphi 0, %s144
    %s145 = sphi 0, %s142
    %s146 = sphi 0, %s145
    %s162 = sphi 0, %s146
  $region4: #{residual_forward.3} parent=0 // loop_header_branch
    %15 = sbr.rel (%p13) target = $region8
  $region5: #{residual_forward.3} parent=0 // loop_body
    %s17 = ssub.s32 %s12, 1
    %s18 = ssub.s32 %s12, 2
    %s19 = sadd.s32 %s12, 1
    %s20 = ssub.s32 %s12, %s19
    %p21 = scmp.eq.s32.totalorder %s20, 0
    %s23 = sadd.s32 %s22, 1
    %s24 = scalar_select %p21, %s22, %s23
    %p27 = pneg %p21
    %p28 = scmp.eq.s32.totalorder %s12, 1
    %p29 = por %p27, %p28
    %p30 = scmp.ne.s32.totalorder %s22, %s25
    %p31 = scmp.eq.s32.totalorder %s12, 0
    %p32 = por %p30, %p31
    %p33 = scmp.ne.s32.totalorder %s22, %s25
    %p34 = scmp.eq.s32.totalorder %s17, 1
    %p35 = por %p33, %p34
    %p36 = scmp.ne.s32.totalorder %s25, %s26
    %p37 = scmp.eq.s32.totalorder %s17, 0
    %p38 = por %p36, %p37
    %p39 = scmp.ne.s32.totalorder %s25, %s26
    %p40 = scmp.eq.s32.totalorder %s18, 1
    %p41 = por %p39, %p40
    %p43 = scmp.ne.s32.totalorder %s26, %s42
    %p44 = scmp.eq.s32.totalorder %s18, 0
    %p45 = por %p43, %p44
    %s47 = sadd.s32 %s46, 1
    %p50 = scmp.eq.s32.totalorder %s12, 1
    %p51 = scmp.ne.s32.totalorder %s46, %s48
    %p52 = scmp.eq.s32.totalorder %s12, 0
    %p53 = por %p51, %p52
    %p54 = scmp.ne.s32.totalorder %s46, %s48
    %p55 = scmp.eq.s32.totalorder %s17, 1
    %p56 = por %p54, %p55
    %p57 = scmp.ne.s32.totalorder %s48, %s49
    %p58 = scmp.eq.s32.totalorder %s17, 0
    %p59 = por %p57, %p58
    %p60 = scmp.ne.s32.totalorder %s48, %s49
    %p61 = scmp.eq.s32.totalorder %s18, 1
    %p62 = por %p60, %p61
    %p64 = scmp.ne.s32.totalorder %s49, %s63
    %p65 = scmp.eq.s32.totalorder %s18, 0
    %p66 = por %p64, %p65
    %s68 = sadd.s32 %s67, 1
    %p71 = scmp.eq.s32.totalorder %s12, 1
    %p72 = scmp.ne.s32.totalorder %s67, %s69
    %p73 = scmp.eq.s32.totalorder %s12, 0
    %p74 = por %p72, %p73
    %p75 = scmp.ne.s32.totalorder %s67, %s69
    %p76 = scmp.eq.s32.totalorder %s17, 1
    %p77 = por %p75, %p76
    %p78 = scmp.ne.s32.totalorder %s69, %s70
    %p79 = scmp.eq.s32.totalorder %s17, 0
    %p80 = por %p78, %p79
    %p81 = scmp.ne.s32.totalorder %s69, %s70
    %p82 = scmp.eq.s32.totalorder %s18, 1
    %p83 = por %p81, %p82
    %p85 = scmp.ne.s32.totalorder %s70, %s84
    %p86 = scmp.eq.s32.totalorder %s18, 0
    %p87 = por %p85, %p86
    %s88 = ssub.s32 %s12, %s19
    %p89 = scmp.eq.s32.totalorder %s88, 0
    %s91 = sadd.s32 %s90, 1
    %s92 = scalar_select %p89, %s90, %s91
    %p95 = pneg %p89
    %p96 = scmp.eq.s32.totalorder %s12, 1
    %p97 = por %p95, %p96
    %p98 = scmp.ne.s32.totalorder %s90, %s93
    %p99 = scmp.eq.s32.totalorder %s12, 0
    %p100 = por %p98, %p99
    %p101 = scmp.ne.s32.totalorder %s90, %s93
    %p102 = scmp.eq.s32.totalorder %s17, 1
    %p103 = por %p101, %p102
    %p104 = scmp.ne.s32.totalorder %s93, %s94
    %p105 = scmp.eq.s32.totalorder %s17, 0
    %p106 = por %p104, %p105
    %p107 = scmp.ne.s32.totalorder %s93, %s94
    %p108 = scmp.eq.s32.totalorder %s18, 1
    %p109 = por %p107, %p108
    %p111 = scmp.ne.s32.totalorder %s94, %s110
    %p112 = scmp.eq.s32.totalorder %s18, 0
    %p113 = por %p111, %p112
    %s114 = ssub.s32 %s12, %s19
    %p115 = scmp.eq.s32.totalorder %s114, 0
    %s117 = sadd.s32 %s116, 1
    %s118 = scalar_select %p115, %s116, %s117
    %p121 = pneg %p115
    %p122 = scmp.eq.s32.totalorder %s12, 1
    %p123 = por %p121, %p122
    %p124 = scmp.ne.s32.totalorder %s116, %s119
    %p125 = scmp.eq.s32.totalorder %s12, 0
    %p126 = por %p124, %p125
    %p127 = scmp.ne.s32.totalorder %s116, %s119
    %p128 = scmp.eq.s32.totalorder %s17, 1
    %p129 = por %p127, %p128
    %p130 = scmp.ne.s32.totalorder %s119, %s120
    %p131 = scmp.eq.s32.totalorder %s17, 0
    %p132 = por %p130, %p131
    %p133 = scmp.ne.s32.totalorder %s119, %s120
    %p134 = scmp.eq.s32.totalorder %s18, 1
    %p135 = por %p133, %p134
    %p137 = scmp.ne.s32.totalorder %s120, %s136
    %p138 = scmp.eq.s32.totalorder %s18, 0
    %p139 = por %p137, %p138
    %s140 = ssub.s32 %s12, %s19
    %p141 = scmp.eq.s32.totalorder %s140, 0
    %s143 = sadd.s32 %s142, 1
    %s144 = scalar_select %p141, %s142, %s143
    %p147 = pneg %p141
    %p148 = scmp.eq.s32.totalorder %s12, 1
    %p149 = por %p147, %p148
    %p150 = scmp.ne.s32.totalorder %s142, %s145
    %p151 = scmp.eq.s32.totalorder %s12, 0
    %p152 = por %p150, %p151
    %p153 = scmp.ne.s32.totalorder %s142, %s145
    %p154 = scmp.eq.s32.totalorder %s17, 1
    %p155 = por %p153, %p154
    %p156 = scmp.ne.s32.totalorder %s145, %s146
    %p157 = scmp.eq.s32.totalorder %s17, 0
    %p158 = por %p156, %p157
    %p159 = scmp.ne.s32.totalorder %s145, %s146
    %p160 = scmp.eq.s32.totalorder %s18, 1
    %p161 = por %p159, %p160
    %p163 = scmp.ne.s32.totalorder %s146, %s162
    %p164 = scmp.eq.s32.totalorder %s18, 0
    %p165 = por %p163, %p164
    %p166 = scmp.le.s32.totalorder 1, %s12
    %p167 = scmp.lt.s32.totalorder %s12, 3
    %p168 = pnand %p166, %p167
    %p169 = pneg %p168
    // Predicated region
    $region9: #{residual_forward.3} parent=5 // pred_check
      _
    $region10: #{residual_forward.3} parent=5 // pred_check_branch
      %171 = sbr.rel (%p168) target = $region12
    $region11: #{residual_forward.3} parent=5 // pred_region
      %s172 = ssub.s32 %s12, 1
      // Predicated region
      $region13: #{residual_forward.3} parent=11 // pred_check
        %p173 = pneg %p59
      $region14: #{residual_forward.3} parent=11 // pred_check_branch
        %175 = sbr.rel (%p173) target = $region16
      $region15: #{residual_forward.3} parent=11 // pred_region
        _
      $region16: #{residual_forward.3} parent=11 // pred_fallthru
        _
      // Predicated region
      $region17: #{residual_forward.3} parent=11 // pred_check
        %p176 = pneg %p80
      $region18: #{residual_forward.3} parent=11 // pred_check_branch
        %178 = sbr.rel (%p176) target = $region20
      $region19: #{residual_forward.3} parent=11 // pred_region
        _
      $region20: #{residual_forward.3} parent=11 // pred_fallthru
        _
    $region12: #{residual_forward.3} parent=5 // pred_fallthru
      _
    %p179 = scmp.lt.s32.totalorder %s12, 2
    // Predicated region
    $region21: #{residual_forward.3} parent=5 // pred_check
      %p180 = pneg %p179
    $region22: #{residual_forward.3} parent=5 // pred_check_branch
      %182 = sbr.rel (%p180) target = $region24
    $region23: #{residual_forward.3} parent=5 // pred_region
      // Predicated region
      $region25: #{residual_forward.3} parent=23 // pred_check
        %p183 = pneg %p32
      $region26: #{residual_forward.3} parent=23 // pred_check_branch
        %185 = sbr.rel (%p183) target = $region28
      $region27: #{residual_forward.3} parent=23 // pred_region
        %p186 = scmp.lt.s32.totalorder %s12, 1
        %s187 = scalar_select %p186, %s12, 1
        %s188 = smul.addr %s187, 2
        %s189 = smul.addr %s188, 8
        %s190 = scalar_lea.vmem %s0, %s189
      $region28: #{residual_forward.3} parent=23 // pred_fallthru
        _
    $region24: #{residual_forward.3} parent=5 // pred_fallthru
      _
    %p191 = scmp.le.s32.totalorder 1, %s12
    %p192 = scmp.lt.s32.totalorder %s12, 3
    %p193 = pnand %p191, %p192
    %p194 = pneg %p193
    // Predicated region
    $region29: #{residual_forward.3} parent=5 // pred_check
      _
    $region30: #{residual_forward.3} parent=5 // pred_check_branch
      %196 = sbr.rel (%p193) target = $region32
    $region31: #{residual_forward.3} parent=5 // pred_region
      %s197 = ssub.s32 %s12, 1
      %p198 = scmp.lt.s32.totalorder %s17, 1
      %s199 = scalar_select %p198, %s17, 1
      %s200 = smul.addr %s199, 2
      %s201 = smul.addr %s200, 8
      %s202 = scalar_lea.vmem %s0, %s201
      %p203 = pneg %p38
      %p204 = pneg %p35
      %p205 = pneg %p59
      %p206 = pneg %p56
      %p207 = pneg %p80
      %p208 = pneg %p77
      %p209 = pneg %p106
      %p210 = pneg %p103
      %p211 = scmp.lt.s32.totalorder %s17, 1
      %s212 = scalar_select %p211, %s17, 1
      %s213 = smul.addr %s212, 2
      %s214 = smul.addr %s213, 8
      %s215 = scalar_lea.vmem %s3, %s214
      %p216 = pneg %p132
      %p217 = pneg %p129
      %p218 = scmp.lt.s32.totalorder %s17, 1
      %s219 = scalar_select %p218, %s17, 1
      %s220 = scalar_lea.vmem %s4, %s219
      %p221 = pneg %p158
      %p222 = pneg %p155
      %p223 = scmp.lt.s32.totalorder %s17, 1
      %s224 = scalar_select %p223, %s17, 1
      %s225 = scalar_lea.vmem %s5, %s224
      %p226 = scmp.lt.s32.totalorder %s17, 1
      %s227 = scalar_select %p226, %s17, 1
      %s228 = smul.addr %s227, 2
      %s229 = smul.addr %s228, 8
      %s230 = scalar_lea.vmem %s0, %s229
      %p231 = scmp.lt.s32.totalorder %s17, 1
      %s232 = scalar_select %p231, %s17, 1
      %s233 = smul.addr %s232, 2
      %s234 = smul.addr %s233, 8
      %s235 = scalar_lea.vmem %s3, %s234
      %p236 = scmp.lt.s32.totalorder %s17, 1
      %s237 = scalar_select %p236, %s17, 1
      %s238 = scalar_lea.vmem %s4, %s237
      %p239 = scmp.lt.s32.totalorder %s17, 1
      %s240 = scalar_select %p239, %s17, 1
      %s241 = scalar_lea.vmem %s5, %s240
      %v243 = vld [vmem:[%s230] sm:$0xff]
      %v244 = vld [vmem:[%s230 + $0x8] sm:$0xff]
      %v245 = vpack.c.bf16 %v244, %v243
      %v246 = vld [vmem:[%s1] sm:$0xf]
      %v247 = vld [vmem:[%s1 + $0x4] sm:$0xf]
      %v248 = vld [vmem:[%s1 + $0x8] sm:$0xf]
      %v249 = vld [vmem:[%s1 + $0xc] sm:$0xf]
      %v250 = vld [vmem:[%s1 + $0x10] sm:$0xf]
      %v251 = vld [vmem:[%s1 + $0x14] sm:$0xf]
      %v252 = vld [vmem:[%s1 + $0x18] sm:$0xf]
      %v253 = vld [vmem:[%s1 + $0x1c] sm:$0xf]
      %v262 = vunpack.c.l.b16 %v246
      %v263 = vunpack.c.l.b16 %v247
      %v264 = vunpack.c.l.b16 %v248
      %v265 = vunpack.c.l.b16 %v249
      %v266 = vunpack.c.l.b16 %v250
      %v267 = vunpack.c.l.b16 %v251
      %v268 = vunpack.c.l.b16 %v252
      %v269 = vunpack.c.l.b16 %v253
      %v270 = vpack.c.b16 %v263, %v262
      %v271 = vpack.c.b16 %v265, %v264
      %v272 = vpack.c.b16 %v267, %v266
      %v273 = vpack.c.b16 %v269, %v268
      %vm278 = vcmask 523264
      %v280 = vsel %vm278, %v245, 0
      %282 = vmatprep.subr.bf16.mxu0 0
      %283 = vmatpush1.bf16.msra.mxu0 0
      %284 = vmatprep.subr.bf16.mxu0 0
      %285 = vmatpush1.bf16.msra.mxu0 0
      %286 = vmatprep.subr.bf16.mxu0 0
      %287 = vmatpush1.bf16.msra.mxu0 0
      %288 = vmatprep.subr.bf16.mxu0 0
      %289 = vmatpush1.bf16.msra.mxu0 0
      %290 = vmatprep.subr.bf16.mxu0 0
      %291 = vmatpush1.bf16.msra.mxu0 %v273
      %292 = vmatprep.subr.bf16.mxu0 0
      %293 = vmatpush1.bf16.msra.mxu0 %v272
      %294 = vmatprep.subr.bf16.mxu0 0
      %295 = vmatpush1.bf16.msra.mxu0 %v271
      %296 = vmatprep.subr.bf16.mxu0 0
      %297 = vmatpush1.bf16.msra.mxu0 %v270
      %298 = vmatprep.subr.bf16.mxu0 0
      %299 = vmatpush2.bf16.msra.mxu0 0
      %300 = vmatprep.subr.bf16.mxu0 0
      %301 = vmatpush2.bf16.msra.mxu0 0
      %302 = vmatprep.subr.bf16.mxu0 0
      %303 = vmatpush2.bf16.msra.mxu0 0
      %304 = vmatprep.subr.bf16.mxu0 0
      %305 = vmatpush2.bf16.msra.mxu0 0
      %306 = vmatprep.subr.bf16.mxu0 0
      %307 = vmatpush2.bf16.msra.mxu0 0
      %308 = vmatprep.subr.bf16.mxu0 0
      %309 = vmatpush2.bf16.msra.mxu0 0
      %310 = vmatprep.subr.bf16.mxu0 0
      %311 = vmatpush2.bf16.msra.mxu0 0
      %312 = vmatprep.subr.bf16.mxu0 0
      %313 = vmatpush2.bf16.msra.mxu0 0
      %314 = vmatprep.mubr.bf16.mxu0 0
      %315 = vmatmul.mubr.bf16.gmra.mxu0 %v280
      %v316 = vpop.f32.mrf.mxu0
      %v317 = vadd.f32 0.0, %v316
      %v318 = vpop.f32.mrf.mxu0
      %v319 = vpop.f32.mrf.mxu0
      %v320 = vadd.f32 0.0, %v319
      %v321 = vpop.f32.mrf.mxu0
      %322 = vdwg.mxu0
      %s323 = scalar_lea.vmem %s1, 32
      %v324 = vld [vmem:[%s323] sm:$0xf]
      %v325 = vld [vmem:[%s323 + $0x4] sm:$0xf]
      %v326 = vld [vmem:[%s323 + $0x8] sm:$0xf]
      %v327 = vld [vmem:[%s323 + $0xc] sm:$0xf]
      %v328 = vld [vmem:[%s323 + $0x10] sm:$0xf]
      %v329 = vld [vmem:[%s323 + $0x14] sm:$0xf]
      %v330 = vld [vmem:[%s323 + $0x18] sm:$0xf]
      %v331 = vld [vmem:[%s323 + $0x1c] sm:$0xf]
      %s332 = scalar_lea.vmem %s1, 64
      %v333 = vld [vmem:[%s332] sm:$0xf]
      %v334 = vld [vmem:[%s332 + $0x4] sm:$0xf]
      %v335 = vld [vmem:[%s332 + $0x8] sm:$0xf]
      %v336 = vld [vmem:[%s332 + $0xc] sm:$0xf]
      %v337 = vld [vmem:[%s332 + $0x10] sm:$0xf]
      %v338 = vld [vmem:[%s332 + $0x14] sm:$0xf]
      %v339 = vld [vmem:[%s332 + $0x18] sm:$0xf]
      %v340 = vld [vmem:[%s332 + $0x1c] sm:$0xf]
      %v349 = vunpack.c.l.b16 %v333
      %v350 = vunpack.c.l.b16 %v334
      %v351 = vunpack.c.l.b16 %v335
      %v352 = vunpack.c.l.b16 %v336
      %v353 = vunpack.c.l.b16 %v337
      %v354 = vunpack.c.l.b16 %v338
      %v355 = vunpack.c.l.b16 %v339
      %v356 = vunpack.c.l.b16 %v340
      %v357 = vpack.c.b16 %v350, %v349
      %v358 = vpack.c.b16 %v352, %v351
      %v359 = vpack.c.b16 %v354, %v353
      %v360 = vpack.c.b16 %v356, %v355
      %365 = vmatprep.subr.bf16.mxu0 0
      %366 = vmatpush1.bf16.msra.mxu0 0
      %367 = vmatprep.subr.bf16.mxu0 0
      %368 = vmatpush1.bf16.msra.mxu0 0
      %369 = vmatprep.subr.bf16.mxu0 0
      %370 = vmatpush1.bf16.msra.mxu0 0
      %371 = vmatprep.subr.bf16.mxu0 0
      %372 = vmatpush1.bf16.msra.mxu0 0
      %373 = vmatprep.subr.bf16.mxu0 0
      %374 = vmatpush1.bf16.msra.mxu0 %v360
      %375 = vmatprep.subr.bf16.mxu0 0
      %376 = vmatpush1.bf16.msra.mxu0 %v359
      %377 = vmatprep.subr.bf16.mxu0 0
      %378 = vmatpush1.bf16.msra.mxu0 %v358
      %379 = vmatprep.subr.bf16.mxu0 0
      %380 = vmatpush1.bf16.msra.mxu0 %v357
      %381 = vmatprep.subr.bf16.mxu0 0
      %382 = vmatpush2.bf16.msra.mxu0 0
      %383 = vmatprep.subr.bf16.mxu0 0
      %384 = vmatpush2.bf16.msra.mxu0 0
      %385 = vmatprep.subr.bf16.mxu0 0
      %386 = vmatpush2.bf16.msra.mxu0 0
      %387 = vmatprep.subr.bf16.mxu0 0
      %388 = vmatpush2.bf16.msra.mxu0 0
      %389 = vmatprep.subr.bf16.mxu0 0
      %390 = vmatpush2.bf16.msra.mxu0 0
      %391 = vmatprep.subr.bf16.mxu0 0
      %392 = vmatpush2.bf16.msra.mxu0 0
      %393 = vmatprep.subr.bf16.mxu0 0
      %394 = vmatpush2.bf16.msra.mxu0 0
      %395 = vmatprep.subr.bf16.mxu0 0
      %396 = vmatpush2.bf16.msra.mxu0 0
      %397 = vmatprep.mubr.bf16.mxu0 0
      %398 = vmatmul.mubr.bf16.gmra.mxu0 %v280
      %v399 = vpop.f32.mrf.mxu0
      %v400 = vadd.f32 0.0, %v399
      %v401 = vpop.f32.mrf.mxu0
      %v402 = vpop.f32.mrf.mxu0
      %v403 = vadd.f32 0.0, %v402
      %v404 = vpop.f32.mrf.mxu0
      %405 = vdwg.mxu0
      %v406 = vlaneseq
      %v407 = vshrl.u32 %v406, 7
      %v408 = vadd.s32 %v407, 8
      %v409 = vlaneseq
      %v410 = vand.u32 %v409, 127
      %v411 = vadd.s32 %v410, 1
      %vm412 = vcmp.eq.s32.totalorder %v407, %v411
      %vm413 = vcmp.eq.s32.totalorder %v408, %v411
      %v414 = vsel %vm412, 1, 0
      %v415 = vsel %vm413, 1, 0
      %v416 = vcvt.s32.f32 %v414
      %v417 = vcvt.s32.f32 %v415
      %v418 = vsub.s32 %v410, 1
      %vm419 = vcmp.eq.s32.totalorder %v407, %v418
      %vm420 = vcmp.eq.s32.totalorder %v408, %v418
      %v421 = vsel %vm419, 1, 0
      %v422 = vsel %vm420, 1, 0
      %v423 = vcvt.s32.f32 %v421
      %v424 = vcvt.s32.f32 %v422
      %vm425 = vcmask 130048
      %v427 = vsel %vm425, %v416, 0
      %v430 = vsel %vm425, %v417, 0
      %432 = vmatprep.subr.mxu0 0.0
      %433 = vmatpush1.msra.mxu0 0.0
      %434 = vmatprep.subr.mxu0 0.0
      %435 = vmatpush1.msra.mxu0 0.0
      %436 = vmatprep.subr.mxu0 0.0
      %437 = vmatpush1.msra.mxu0 0.0
      %438 = vmatprep.subr.mxu0 0.0
      %439 = vmatpush1.msra.mxu0 0.0
      %440 = vmatprep.subr.mxu0 0.0
      %441 = vmatpush1.msra.mxu0 0.0
      %442 = vmatprep.subr.mxu0 0.0
      %443 = vmatpush1.msra.mxu0 0.0
      %444 = vmatprep.subr.mxu0 0.0
      %445 = vmatpush1.msra.mxu0 0.0
      %446 = vmatprep.subr.mxu0 0.0
      %447 = vmatpush1.msra.mxu0 0.0
      %448 = vmatprep.subr.mxu0 0.0
      %449 = vmatpush1.msra.mxu0 0.0
      %450 = vmatprep.subr.mxu0 0.0
      %451 = vmatpush1.msra.mxu0 0.0
      %452 = vmatprep.subr.mxu0 0.0
      %453 = vmatpush1.msra.mxu0 0.0
      %454 = vmatprep.subr.mxu0 0.0
      %455 = vmatpush1.msra.mxu0 0.0
      %456 = vmatprep.subr.mxu0 0.0
      %457 = vmatpush1.msra.mxu0 0.0
      %458 = vmatprep.subr.mxu0 0.0
      %459 = vmatpush1.msra.mxu0 0.0
      %460 = vmatprep.subr.mxu0 0.0
      %461 = vmatpush1.msra.mxu0 %v320
      %462 = vmatprep.subr.mxu0 0.0
      %463 = vmatpush1.msra.mxu0 %v317
      %464 = vmatprep.subr.mxu0 0.0
      %465 = vmatpush2.msra.mxu0 0.0
      %466 = vmatprep.subr.mxu0 0.0
      %467 = vmatpush2.msra.mxu0 0.0
      %468 = vmatprep.subr.mxu0 0.0
      %469 = vmatpush2.msra.mxu0 0.0
      %470 = vmatprep.subr.mxu0 0.0
      %471 = vmatpush2.msra.mxu0 0.0
      %472 = vmatprep.subr.mxu0 0.0
      %473 = vmatpush2.msra.mxu0 0.0
      %474 = vmatprep.subr.mxu0 0.0
      %475 = vmatpush2.msra.mxu0 0.0
      %476 = vmatprep.subr.mxu0 0.0
      %477 = vmatpush2.msra.mxu0 0.0
      %478 = vmatprep.subr.mxu0 0.0
      %479 = vmatpush2.msra.mxu0 0.0
      %480 = vmatprep.subr.mxu0 0.0
      %481 = vmatpush2.msra.mxu0 0.0
      %482 = vmatprep.subr.mxu0 0.0
      %483 = vmatpush2.msra.mxu0 0.0
      %484 = vmatprep.subr.mxu0 0.0
      %485 = vmatpush2.msra.mxu0 0.0
      %486 = vmatprep.subr.mxu0 0.0
      %487 = vmatpush2.msra.mxu0 0.0
      %488 = vmatprep.subr.mxu0 0.0
      %489 = vmatpush2.msra.mxu0 0.0
      %490 = vmatprep.subr.mxu0 0.0
      %491 = vmatpush2.msra.mxu0 0.0
      %492 = vmatprep.subr.mxu0 0.0
      %493 = vmatpush2.msra.mxu0 0.0
      %494 = vmatprep.subr.mxu0 0.0
      %495 = vmatpush2.msra.mxu0 0.0
      %496 = vmatprep.mubr.f32.mxu0 0.0
      %497 = vmatmul.mubr.f32.gmra.mxu0 %v427
      %v498 = vpop.f32.mrf.mxu0
      %v499 = vadd.f32 0.0, %v498
      %v500 = vpop.f32.mrf.mxu0
      %501 = vmatprep.mubr.f32.mxu0 0.0
      %502 = vmatmul.mubr.f32.gmra.mxu0 %v430
      %v503 = vpop.f32.mrf.mxu0
      %v504 = vadd.f32 0.0, %v503
      %v505 = vpop.f32.mrf.mxu0
      %506 = vdwg.mxu0
      %v515 = vunpack.c.l.b16 %v324
      %v516 = vunpack.c.l.b16 %v325
      %v517 = vunpack.c.l.b16 %v326
      %v518 = vunpack.c.l.b16 %v327
      %v519 = vunpack.c.l.b16 %v328
      %v520 = vunpack.c.l.b16 %v329
      %v521 = vunpack.c.l.b16 %v330
      %v522 = vunpack.c.l.b16 %v331
      %v523 = vpack.c.b16 %v516, %v515
      %v524 = vpack.c.b16 %v518, %v517
      %v525 = vpack.c.b16 %v520, %v519
      %v526 = vpack.c.b16 %v522, %v521
      %531 = vmatprep.subr.bf16.mxu0 0
      %532 = vmatpush1.bf16.msra.mxu0 0
      %533 = vmatprep.subr.bf16.mxu0 0
      %534 = vmatpush1.bf16.msra.mxu0 0
      %535 = vmatprep.subr.bf16.mxu0 0
      %536 = vmatpush1.bf16.msra.mxu0 0
      %537 = vmatprep.subr.bf16.mxu0 0
      %538 = vmatpush1.bf16.msra.mxu0 0
      %539 = vmatprep.subr.bf16.mxu0 0
      %540 = vmatpush1.bf16.msra.mxu0 %v526
      %541 = vmatprep.subr.bf16.mxu0 0
      %542 = vmatpush1.bf16.msra.mxu0 %v525
      %543 = vmatprep.subr.bf16.mxu0 0
      %544 = vmatpush1.bf16.msra.mxu0 %v524
      %545 = vmatprep.subr.bf16.mxu0 0
      %546 = vmatpush1.bf16.msra.mxu0 %v523
      %547 = vmatprep.subr.bf16.mxu0 0
      %548 = vmatpush2.bf16.msra.mxu0 0
      %549 = vmatprep.subr.bf16.mxu0 0
      %550 = vmatpush2.bf16.msra.mxu0 0
      %551 = vmatprep.subr.bf16.mxu0 0
      %552 = vmatpush2.bf16.msra.mxu0 0
      %553 = vmatprep.subr.bf16.mxu0 0
      %554 = vmatpush2.bf16.msra.mxu0 0
      %555 = vmatprep.subr.bf16.mxu0 0
      %556 = vmatpush2.bf16.msra.mxu0 0
      %557 = vmatprep.subr.bf16.mxu0 0
      %558 = vmatpush2.bf16.msra.mxu0 0
      %559 = vmatprep.subr.bf16.mxu0 0
      %560 = vmatpush2.bf16.msra.mxu0 0
      %561 = vmatprep.subr.bf16.mxu0 0
      %562 = vmatpush2.bf16.msra.mxu0 0
      %563 = vmatprep.mubr.bf16.mxu0 0
      %564 = vmatmul.mubr.bf16.gmra.mxu0 %v280
      %v565 = vpop.f32.mrf.mxu0
      %v566 = vadd.f32 %v499, %v565
      %v567 = vpop.f32.mrf.mxu0
      %v568 = vpop.f32.mrf.mxu0
      %v569 = vadd.f32 %v504, %v568
      %v570 = vpop.f32.mrf.mxu0
      %571 = vdwg.mxu0
      %v573 = vsel %vm425, %v423, 0
      %v576 = vsel %vm425, %v424, 0
      %578 = vmatprep.subr.mxu0 0.0
      %579 = vmatpush1.msra.mxu0 0.0
      %580 = vmatprep.subr.mxu0 0.0
      %581 = vmatpush1.msra.mxu0 0.0
      %582 = vmatprep.subr.mxu0 0.0
      %583 = vmatpush1.msra.mxu0 0.0
      %584 = vmatprep.subr.mxu0 0.0
      %585 = vmatpush1.msra.mxu0 0.0
      %586 = vmatprep.subr.mxu0 0.0
      %587 = vmatpush1.msra.mxu0 0.0
      %588 = vmatprep.subr.mxu0 0.0
      %589 = vmatpush1.msra.mxu0 0.0
      %590 = vmatprep.subr.mxu0 0.0
      %591 = vmatpush1.msra.mxu0 0.0
      %592 = vmatprep.subr.mxu0 0.0
      %593 = vmatpush1.msra.mxu0 0.0
      %594 = vmatprep.subr.mxu0 0.0
      %595 = vmatpush1.msra.mxu0 0.0
      %596 = vmatprep.subr.mxu0 0.0
      %597 = vmatpush1.msra.mxu0 0.0
      %598 = vmatprep.subr.mxu0 0.0
      %599 = vmatpush1.msra.mxu0 0.0
      %600 = vmatprep.subr.mxu0 0.0
      %601 = vmatpush1.msra.mxu0 0.0
      %602 = vmatprep.subr.mxu0 0.0
      %603 = vmatpush1.msra.mxu0 0.0
      %604 = vmatprep.subr.mxu0 0.0
      %605 = vmatpush1.msra.mxu0 0.0
      %606 = vmatprep.subr.mxu0 0.0
      %607 = vmatpush1.msra.mxu0 %v403
      %608 = vmatprep.subr.mxu0 0.0
      %609 = vmatpush1.msra.mxu0 %v400
      %610 = vmatprep.subr.mxu0 0.0
      %611 = vmatpush2.msra.mxu0 0.0
      %612 = vmatprep.subr.mxu0 0.0
      %613 = vmatpush2.msra.mxu0 0.0
      %614 = vmatprep.subr.mxu0 0.0
      %615 = vmatpush2.msra.mxu0 0.0
      %616 = vmatprep.subr.mxu0 0.0
      %617 = vmatpush2.msra.mxu0 0.0
      %618 = vmatprep.subr.mxu0 0.0
      %619 = vmatpush2.msra.mxu0 0.0
      %620 = vmatprep.subr.mxu0 0.0
      %621 = vmatpush2.msra.mxu0 0.0
      %622 = vmatprep.subr.mxu0 0.0
      %623 = vmatpush2.msra.mxu0 0.0
      %624 = vmatprep.subr.mxu0 0.0
      %625 = vmatpush2.msra.mxu0 0.0
      %626 = vmatprep.subr.mxu0 0.0
      %627 = vmatpush2.msra.mxu0 0.0
      %628 = vmatprep.subr.mxu0 0.0
      %629 = vmatpush2.msra.mxu0 0.0
      %630 = vmatprep.subr.mxu0 0.0
      %631 = vmatpush2.msra.mxu0 0.0
      %632 = vmatprep.subr.mxu0 0.0
      %633 = vmatpush2.msra.mxu0 0.0
      %634 = vmatprep.subr.mxu0 0.0
      %635 = vmatpush2.msra.mxu0 0.0
      %636 = vmatprep.subr.mxu0 0.0
      %637 = vmatpush2.msra.mxu0 0.0
      %638 = vmatprep.subr.mxu0 0.0
      %639 = vmatpush2.msra.mxu0 0.0
      %640 = vmatprep.subr.mxu0 0.0
      %641 = vmatpush2.msra.mxu0 0.0
      %642 = vmatprep.mubr.f32.mxu0 0.0
      %643 = vmatmul.mubr.f32.gmra.mxu0 %v573
      %v644 = vpop.f32.mrf.mxu0
      %v645 = vadd.f32 0.0, %v644
      %v646 = vpop.f32.mrf.mxu0
      %647 = vmatprep.mubr.f32.mxu0 0.0
      %648 = vmatmul.mubr.f32.gmra.mxu0 %v576
      %v649 = vpop.f32.mrf.mxu0
      %v650 = vadd.f32 0.0, %v649
      %v651 = vpop.f32.mrf.mxu0
      %652 = vdwg.mxu0
      %v653 = vadd.f32 %v566, %v645
      %v654 = vadd.f32 %v569, %v650
      %v655 = vld [vmem:[%s2] sm:$0x1]
      %v657 = vlaneseq
      %v658 = vshrl.u32 %v657, 7
      %v659 = vsub.s32 0, %v658
      %v660 = vrot.slane %v655, %v659
      %v662 = vadd.f32 %v653, %v660
      %v663 = vadd.f32 %v654, %v660
      %664 = vst [vmem:[%s235] sm:$0xff] %v662
      %665 = vst [vmem:[%s235 + $0x8] sm:$0xff] %v663
      %v666 = vadd.f32 %v662, %v663
      %v667 = vrot.slane %v666, 4
      %v668 = vadd.f32 %v666, %v667
      %v669 = vrot.slane %v668, 2
      %v670 = vadd.f32 %v668, %v669
      %v671 = vrot.slane %v670, 1
      %v672 = vadd.f32 %v670, %v671
      %673 = vst [vmem:[%s238] sm:$0x1] %v672
      %v674 = vmul.f32 %v662, %v662
      %v675 = vmul.f32 %v663, %v663
      %v676 = vadd.f32 %v674, %v675
      %v677 = vrot.slane %v676, 4
      %v678 = vadd.f32 %v676, %v677
      %v679 = vrot.slane %v678, 2
      %v680 = vadd.f32 %v678, %v679
      %v681 = vrot.slane %v680, 1
      %v682 = vadd.f32 %v680, %v681
      %683 = vst [vmem:[%s241] sm:$0x1] %v682
      %p684 = scmp.lt.s32.totalorder %s17, 1
      %s685 = scalar_select %p684, %s17, 1
      %s686 = smul.addr %s685, 2
      %s687 = smul.addr %s686, 8
      %s688 = scalar_lea.vmem %s3, %s687
      %p689 = scmp.lt.s32.totalorder %s17, 1
      %s690 = scalar_select %p689, %s17, 1
      %s691 = scalar_lea.vmem %s4, %s690
      %p692 = scmp.lt.s32.totalorder %s17, 1
      %s693 = scalar_select %p692, %s17, 1
      %s694 = scalar_lea.vmem %s5, %s693
      // Predicated region
      $region33: #{residual_forward.3} parent=31 // pred_check
        %p695 = pneg %p103
      $region34: #{residual_forward.3} parent=31 // pred_check_branch
        %697 = sbr.rel (%p695) target = $region36
      $region35: #{residual_forward.3} parent=31 // pred_region
        _
      $region36: #{residual_forward.3} parent=31 // pred_fallthru
        _
      // Predicated region
      $region37: #{residual_forward.3} parent=31 // pred_check
        %p698 = pneg %p129
      $region38: #{residual_forward.3} parent=31 // pred_check_branch
        %700 = sbr.rel (%p698) target = $region40
      $region39: #{residual_forward.3} parent=31 // pred_region
        _
      $region40: #{residual_forward.3} parent=31 // pred_fallthru
        _
      // Predicated region
      $region41: #{residual_forward.3} parent=31 // pred_check
        %p701 = pneg %p155
      $region42: #{residual_forward.3} parent=31 // pred_check_branch
        %703 = sbr.rel (%p701) target = $region44
      $region43: #{residual_forward.3} parent=31 // pred_region
        _
      $region44: #{residual_forward.3} parent=31 // pred_fallthru
        _
    $region32: #{residual_forward.3} parent=5 // pred_fallthru
      _
    %p704 = scmp.le.s32.totalorder 2, %s12
    // Predicated region
    $region45: #{residual_forward.3} parent=5 // pred_check
      %p705 = pneg %p704
    $region46: #{residual_forward.3} parent=5 // pred_check_branch
      %707 = sbr.rel (%p705) target = $region48
    $region47: #{residual_forward.3} parent=5 // pred_region
      %s708 = ssub.s32 %s12, 2
      // Predicated region
      $region49: #{residual_forward.3} parent=47 // pred_check
        %p709 = pneg %p109
      $region50: #{residual_forward.3} parent=47 // pred_check_branch
        %711 = sbr.rel (%p709) target = $region52
      $region51: #{residual_forward.3} parent=47 // pred_region
        %p712 = scmp.lt.s32.totalorder %s18, 1
        %s713 = scalar_select %p712, %s18, 1
        %s714 = smul.addr %s713, 2
        %s715 = smul.addr %s714, 8
        %s716 = scalar_lea.vmem %s3, %s715
      $region52: #{residual_forward.3} parent=47 // pred_fallthru
        _
      // Predicated region
      $region53: #{residual_forward.3} parent=47 // pred_check
        %p717 = pneg %p135
      $region54: #{residual_forward.3} parent=47 // pred_check_branch
        %719 = sbr.rel (%p717) target = $region56
      $region55: #{residual_forward.3} parent=47 // pred_region
        %p720 = scmp.lt.s32.totalorder %s18, 1
        %s721 = scalar_select %p720, %s18, 1
        %s722 = scalar_lea.vmem %s4, %s721
      $region56: #{residual_forward.3} parent=47 // pred_fallthru
        _
      // Predicated region
      $region57: #{residual_forward.3} parent=47 // pred_check
        %p723 = pneg %p161
      $region58: #{residual_forward.3} parent=47 // pred_check_branch
        %725 = sbr.rel (%p723) target = $region60
      $region59: #{residual_forward.3} parent=47 // pred_region
        %p726 = scmp.lt.s32.totalorder %s18, 1
        %s727 = scalar_select %p726, %s18, 1
        %s728 = scalar_lea.vmem %s5, %s727
      $region60: #{residual_forward.3} parent=47 // pred_fallthru
        _
    $region48: #{residual_forward.3} parent=5 // pred_fallthru
      _
  $region6: #{residual_forward.3} parent=0 // loop_footer
    %s16 = sadd.s32 1, %s12
  $region7: #{residual_forward.3} parent=0 // loop_footer_branch
    %11 = sbr.rel target = $region3
  $region8: #{residual_forward.3} parent=0 // loop_exit
    _

// kernel: residual_forward.4
$region0: #{residual_forward.4}
  #allocation0 [shape = 'u32[]', space=smem, size = 0x4, offset = 0x4, fixed_abs, tag = 'smem constant byte address 0x4 - core index']
  #allocation1 [shape = 'u32[144,128]{1,0:T(1,128)}', space=vmem, size = 0x12000, scoped, tag = 'internal scratch']
  %s0 = inlined_call_operand.vmem [shape: f32[2,16,128], index: 0, kind: input, shape index: {}]
  %s1 = inlined_call_operand.vmem [shape: f32[1,128], index: 1, kind: input, shape index: {}]
  %s2 = inlined_call_operand.vmem [shape: f32[1,128], index: 2, kind: input, shape index: {}]
  %s3 = inlined_call_operand.vmem [shape: bf16[3,128,128], index: 3, kind: input, shape index: {}]
  %s4 = inlined_call_operand.vmem [shape: f32[1,128], index: 4, kind: input, shape index: {}]
  %s5 = inlined_call_operand.vmem [shape: f32[2,16,128], index: 5, kind: output, shape index: {0}]
  %s6 = inlined_call_operand.vmem [shape: f32[2,1,128], index: 6, kind: output, shape index: {1}]
  %s7 = inlined_call_operand.vmem [shape: f32[2,1,128], index: 7, kind: output, shape index: {2}]
  %8 = xla_tuple %s5, %s6, %s7
  %s9 = sld [smem:[#allocation0]]
  $region69: #{residual_forward.4} parent=0
    _
  %s11 = ssub.s32 1, %s9
  %s12 = scalar_select 0, %s11, %s9
  loop: start=0, step=1, limit=4
  $region2: #{residual_forward.4} parent=0 // loop_pre_header
    _
  $region3: #{residual_forward.4} parent=0 // loop_header
    %s14 = sphi 0, %s18
    %p15 = scmp.ge.s32.totalorder %s14, 4
    %s24 = sphi 0, %s26
    %s27 = sphi 0, %s24
    %s28 = sphi 0, %s27
    %s44 = sphi 0, %s28
    %s48 = sphi 0, %s48
    %s50 = sphi 0, %s48
    %s51 = sphi 0, %s50
    %s65 = sphi 0, %s51
    %s69 = sphi 0, %s69
    %s71 = sphi 0, %s69
    %s72 = sphi 0, %s71
    %s86 = sphi 0, %s72
    %s90 = sphi 0, %s90
    %s92 = sphi 0, %s90
    %s93 = sphi 0, %s92
    %s107 = sphi 0, %s93
    %s111 = sphi 0, %s111
    %s113 = sphi 0, %s111
    %s114 = sphi 0, %s113
    %s128 = sphi 0, %s114
    %s134 = sphi 0, %s136
    %s137 = sphi 0, %s134
    %s138 = sphi 0, %s137
    %s154 = sphi 0, %s138
    %s160 = sphi 0, %s162
    %s163 = sphi 0, %s160
    %s164 = sphi 0, %s163
    %s180 = sphi 0, %s164
    %s186 = sphi 0, %s188
    %s189 = sphi 0, %s186
    %s190 = sphi 0, %s189
    %s206 = sphi 0, %s190
  $region4: #{residual_forward.4} parent=0 // loop_header_branch
    %17 = sbr.rel (%p15) target = $region8
  $region5: #{residual_forward.4} parent=0 // loop_body
    %s19 = ssub.s32 %s14, 1
    %s20 = ssub.s32 %s14, 2
    %s21 = sadd.s32 %s14, 1
    %s22 = ssub.s32 %s14, %s21
    %p23 = scmp.eq.s32.totalorder %s22, 0
    %s25 = sadd.s32 %s24, 1
    %s26 = scalar_select %p23, %s24, %s25
    %p29 = pneg %p23
    %p30 = scmp.eq.s32.totalorder %s14, 1
    %p31 = por %p29, %p30
    %p32 = scmp.ne.s32.totalorder %s24, %s27
    %p33 = scmp.eq.s32.totalorder %s14, 0
    %p34 = por %p32, %p33
    %p35 = scmp.ne.s32.totalorder %s24, %s27
    %p36 = scmp.eq.s32.totalorder %s19, 1
    %p37 = por %p35, %p36
    %p38 = scmp.ne.s32.totalorder %s27, %s28
    %p39 = scmp.eq.s32.totalorder %s19, 0
    %p40 = por %p38, %p39
    %p41 = scmp.ne.s32.totalorder %s27, %s28
    %p42 = scmp.eq.s32.totalorder %s20, 1
    %p43 = por %p41, %p42
    %p45 = scmp.ne.s32.totalorder %s28, %s44
    %p46 = scmp.eq.s32.totalorder %s20, 0
    %p47 = por %p45, %p46
    %s49 = sadd.s32 %s48, 1
    %p52 = scmp.eq.s32.totalorder %s14, 1
    %p53 = scmp.ne.s32.totalorder %s48, %s50
    %p54 = scmp.eq.s32.totalorder %s14, 0
    %p55 = por %p53, %p54
    %p56 = scmp.ne.s32.totalorder %s48, %s50
    %p57 = scmp.eq.s32.totalorder %s19, 1
    %p58 = por %p56, %p57
    %p59 = scmp.ne.s32.totalorder %s50, %s51
    %p60 = scmp.eq.s32.totalorder %s19, 0
    %p61 = por %p59, %p60
    %p62 = scmp.ne.s32.totalorder %s50, %s51
    %p63 = scmp.eq.s32.totalorder %s20, 1
    %p64 = por %p62, %p63
    %p66 = scmp.ne.s32.totalorder %s51, %s65
    %p67 = scmp.eq.s32.totalorder %s20, 0
    %p68 = por %p66, %p67
    %s70 = sadd.s32 %s69, 1
    %p73 = scmp.eq.s32.totalorder %s14, 1
    %p74 = scmp.ne.s32.totalorder %s69, %s71
    %p75 = scmp.eq.s32.totalorder %s14, 0
    %p76 = por %p74, %p75
    %p77 = scmp.ne.s32.totalorder %s69, %s71
    %p78 = scmp.eq.s32.totalorder %s19, 1
    %p79 = por %p77, %p78
    %p80 = scmp.ne.s32.totalorder %s71, %s72
    %p81 = scmp.eq.s32.totalorder %s19, 0
    %p82 = por %p80, %p81
    %p83 = scmp.ne.s32.totalorder %s71, %s72
    %p84 = scmp.eq.s32.totalorder %s20, 1
    %p85 = por %p83, %p84
    %p87 = scmp.ne.s32.totalorder %s72, %s86
    %p88 = scmp.eq.s32.totalorder %s20, 0
    %p89 = por %p87, %p88
    %s91 = sadd.s32 %s90, 1
    %p94 = scmp.eq.s32.totalorder %s14, 1
    %p95 = scmp.ne.s32.totalorder %s90, %s92
    %p96 = scmp.eq.s32.totalorder %s14, 0
    %p97 = por %p95, %p96
    %p98 = scmp.ne.s32.totalorder %s90, %s92
    %p99 = scmp.eq.s32.totalorder %s19, 1
    %p100 = por %p98, %p99
    %p101 = scmp.ne.s32.totalorder %s92, %s93
    %p102 = scmp.eq.s32.totalorder %s19, 0
    %p103 = por %p101, %p102
    %p104 = scmp.ne.s32.totalorder %s92, %s93
    %p105 = scmp.eq.s32.totalorder %s20, 1
    %p106 = por %p104, %p105
    %p108 = scmp.ne.s32.totalorder %s93, %s107
    %p109 = scmp.eq.s32.totalorder %s20, 0
    %p110 = por %p108, %p109
    %s112 = sadd.s32 %s111, 1
    %p115 = scmp.eq.s32.totalorder %s14, 1
    %p116 = scmp.ne.s32.totalorder %s111, %s113
    %p117 = scmp.eq.s32.totalorder %s14, 0
    %p118 = por %p116, %p117
    %p119 = scmp.ne.s32.totalorder %s111, %s113
    %p120 = scmp.eq.s32.totalorder %s19, 1
    %p121 = por %p119, %p120
    %p122 = scmp.ne.s32.totalorder %s113, %s114
    %p123 = scmp.eq.s32.totalorder %s19, 0
    %p124 = por %p122, %p123
    %p125 = scmp.ne.s32.totalorder %s113, %s114
    %p126 = scmp.eq.s32.totalorder %s20, 1
    %p127 = por %p125, %p126
    %p129 = scmp.ne.s32.totalorder %s114, %s128
    %p130 = scmp.eq.s32.totalorder %s20, 0
    %p131 = por %p129, %p130
    %s132 = ssub.s32 %s14, %s21
    %p133 = scmp.eq.s32.totalorder %s132, 0
    %s135 = sadd.s32 %s134, 1
    %s136 = scalar_select %p133, %s134, %s135
    %p139 = pneg %p133
    %p140 = scmp.eq.s32.totalorder %s14, 1
    %p141 = por %p139, %p140
    %p142 = scmp.ne.s32.totalorder %s134, %s137
    %p143 = scmp.eq.s32.totalorder %s14, 0
    %p144 = por %p142, %p143
    %p145 = scmp.ne.s32.totalorder %s134, %s137
    %p146 = scmp.eq.s32.totalorder %s19, 1
    %p147 = por %p145, %p146
    %p148 = scmp.ne.s32.totalorder %s137, %s138
    %p149 = scmp.eq.s32.totalorder %s19, 0
    %p150 = por %p148, %p149
    %p151 = scmp.ne.s32.totalorder %s137, %s138
    %p152 = scmp.eq.s32.totalorder %s20, 1
    %p153 = por %p151, %p152
    %p155 = scmp.ne.s32.totalorder %s138, %s154
    %p156 = scmp.eq.s32.totalorder %s20, 0
    %p157 = por %p155, %p156
    %s158 = ssub.s32 %s14, %s21
    %p159 = scmp.eq.s32.totalorder %s158, 0
    %s161 = sadd.s32 %s160, 1
    %s162 = scalar_select %p159, %s160, %s161
    %p165 = pneg %p159
    %p166 = scmp.eq.s32.totalorder %s14, 1
    %p167 = por %p165, %p166
    %p168 = scmp.ne.s32.totalorder %s160, %s163
    %p169 = scmp.eq.s32.totalorder %s14, 0
    %p170 = por %p168, %p169
    %p171 = scmp.ne.s32.totalorder %s160, %s163
    %p172 = scmp.eq.s32.totalorder %s19, 1
    %p173 = por %p171, %p172
    %p174 = scmp.ne.s32.totalorder %s163, %s164
    %p175 = scmp.eq.s32.totalorder %s19, 0
    %p176 = por %p174, %p175
    %p177 = scmp.ne.s32.totalorder %s163, %s164
    %p178 = scmp.eq.s32.totalorder %s20, 1
    %p179 = por %p177, %p178
    %p181 = scmp.ne.s32.totalorder %s164, %s180
    %p182 = scmp.eq.s32.totalorder %s20, 0
    %p183 = por %p181, %p182
    %s184 = ssub.s32 %s14, %s21
    %p185 = scmp.eq.s32.totalorder %s184, 0
    %s187 = sadd.s32 %s186, 1
    %s188 = scalar_select %p185, %s186, %s187
    %p191 = pneg %p185
    %p192 = scmp.eq.s32.totalorder %s14, 1
    %p193 = por %p191, %p192
    %p194 = scmp.ne.s32.totalorder %s186, %s189
    %p195 = scmp.eq.s32.totalorder %s14, 0
    %p196 = por %p194, %p195
    %p197 = scmp.ne.s32.totalorder %s186, %s189
    %p198 = scmp.eq.s32.totalorder %s19, 1
    %p199 = por %p197, %p198
    %p200 = scmp.ne.s32.totalorder %s189, %s190
    %p201 = scmp.eq.s32.totalorder %s19, 0
    %p202 = por %p200, %p201
    %p203 = scmp.ne.s32.totalorder %s189, %s190
    %p204 = scmp.eq.s32.totalorder %s20, 1
    %p205 = por %p203, %p204
    %p207 = scmp.ne.s32.totalorder %s190, %s206
    %p208 = scmp.eq.s32.totalorder %s20, 0
    %p209 = por %p207, %p208
    %p210 = scmp.le.s32.totalorder 1, %s14
    %p211 = scmp.lt.s32.totalorder %s14, 3
    %p212 = pnand %p210, %p211
    %p213 = pneg %p212
    // Predicated region
    $region9: #{residual_forward.4} parent=5 // pred_check
      _
    $region10: #{residual_forward.4} parent=5 // pred_check_branch
      %215 = sbr.rel (%p212) target = $region12
    $region11: #{residual_forward.4} parent=5 // pred_region
      %s216 = ssub.s32 %s14, 1
      // Predicated region
      $region13: #{residual_forward.4} parent=11 // pred_check
        %p217 = pneg %p61
      $region14: #{residual_forward.4} parent=11 // pred_check_branch
        %219 = sbr.rel (%p217) target = $region16
      $region15: #{residual_forward.4} parent=11 // pred_region
        _
      $region16: #{residual_forward.4} parent=11 // pred_fallthru
        _
      // Predicated region
      $region17: #{residual_forward.4} parent=11 // pred_check
        %p220 = pneg %p82
      $region18: #{residual_forward.4} parent=11 // pred_check_branch
        %222 = sbr.rel (%p220) target = $region20
      $region19: #{residual_forward.4} parent=11 // pred_region
        _
      $region20: #{residual_forward.4} parent=11 // pred_fallthru
        _
      // Predicated region
      $region21: #{residual_forward.4} parent=11 // pred_check
        %p223 = pneg %p103
      $region22: #{residual_forward.4} parent=11 // pred_check_branch
        %225 = sbr.rel (%p223) target = $region24
      $region23: #{residual_forward.4} parent=11 // pred_region
        _
      $region24: #{residual_forward.4} parent=11 // pred_fallthru
        _
      // Predicated region
      $region25: #{residual_forward.4} parent=11 // pred_check
        %p226 = pneg %p124
      $region26: #{residual_forward.4} parent=11 // pred_check_branch
        %228 = sbr.rel (%p226) target = $region28
      $region27: #{residual_forward.4} parent=11 // pred_region
        _
      $region28: #{residual_forward.4} parent=11 // pred_fallthru
        _
    $region12: #{residual_forward.4} parent=5 // pred_fallthru
      _
    %p229 = scmp.lt.s32.totalorder %s14, 2
    // Predicated region
    $region29: #{residual_forward.4} parent=5 // pred_check
      %p230 = pneg %p229
    $region30: #{residual_forward.4} parent=5 // pred_check_branch
      %232 = sbr.rel (%p230) target = $region32
    $region31: #{residual_forward.4} parent=5 // pred_region
      // Predicated region
      $region33: #{residual_forward.4} parent=31 // pred_check
        %p233 = pneg %p34
      $region34: #{residual_forward.4} parent=31 // pred_check_branch
        %235 = sbr.rel (%p233) target = $region36
      $region35: #{residual_forward.4} parent=31 // pred_region
        %p236 = scmp.lt.s32.totalorder %s14, 1
        %s237 = scalar_select %p236, %s14, 1
        %s238 = smul.addr %s237, 2
        %s239 = smul.addr %s238, 8
        %s240 = scalar_lea.vmem %s0, %s239
      $region36: #{residual_forward.4} parent=31 // pred_fallthru
        _
    $region32: #{residual_forward.4} parent=5 // pred_fallthru
      _
    %p241 = scmp.le.s32.totalorder 1, %s14
    %p242 = scmp.lt.s32.totalorder %s14, 3
    %p243 = pnand %p241, %p242
    %p244 = pneg %p243
    // Predicated region
    $region37: #{residual_forward.4} parent=5 // pred_check
      _
    $region38: #{residual_forward.4} parent=5 // pred_check_branch
      %246 = sbr.rel (%p243) target = $region40
    $region39: #{residual_forward.4} parent=5 // pred_region
      %s247 = ssub.s32 %s14, 1
      %p248 = scmp.lt.s32.totalorder %s19, 1
      %s249 = scalar_select %p248, %s19, 1
      %s250 = smul.addr %s249, 2
      %s251 = smul.addr %s250, 8
      %s252 = scalar_lea.vmem %s0, %s251
      %p253 = pneg %p40
      %p254 = pneg %p37
      %p255 = pneg %p61
      %p256 = pneg %p58
      %p257 = pneg %p82
      %p258 = pneg %p79
      %p259 = pneg %p103
      %p260 = pneg %p100
      %p261 = pneg %p124
      %p262 = pneg %p121
      %p263 = pneg %p150
      %p264 = pneg %p147
      %p265 = scmp.lt.s32.totalorder %s19, 1
      %s266 = scalar_select %p265, %s19, 1
      %s267 = smul.addr %s266, 2
      %s268 = smul.addr %s267, 8
      %s269 = scalar_lea.vmem %s5, %s268
      %p270 = pneg %p176
      %p271 = pneg %p173
      %p272 = scmp.lt.s32.totalorder %s19, 1
      %s273 = scalar_select %p272, %s19, 1
      %s274 = scalar_lea.vmem %s6, %s273
      %p275 = pneg %p202
      %p276 = pneg %p199
      %p277 = scmp.lt.s32.totalorder %s19, 1
      %s278 = scalar_select %p277, %s19, 1
      %s279 = scalar_lea.vmem %s7, %s278
      %p280 = scmp.lt.s32.totalorder %s19, 1
      %s281 = scalar_select %p280, %s19, 1
      %s282 = smul.addr %s281, 2
      %s283 = smul.addr %s282, 8
      %s284 = scalar_lea.vmem %s0, %s283
      %p285 = scmp.lt.s32.totalorder %s19, 1
      %s286 = scalar_select %p285, %s19, 1
      %s287 = smul.addr %s286, 2
      %s288 = smul.addr %s287, 8
      %s289 = scalar_lea.vmem %s5, %s288
      %p290 = scmp.lt.s32.totalorder %s19, 1
      %s291 = scalar_select %p290, %s19, 1
      %s292 = scalar_lea.vmem %s6, %s291
      %p293 = scmp.lt.s32.totalorder %s19, 1
      %s294 = scalar_select %p293, %s19, 1
      %s295 = scalar_lea.vmem %s7, %s294
      %v297 = vld [vmem:[%s284] sm:$0xff]
      %v298 = vld [vmem:[%s284 + $0x8] sm:$0xff]
      %v299 = vld [vmem:[%s1] sm:$0x1]
      %v301 = vlaneseq
      %v302 = vshrl.u32 %v301, 7
      %v303 = vsub.s32 0, %v302
      %v304 = vrot.slane %v299, %v303
      %v306 = vmul.f32 %v297, %v304
      %v307 = vmul.f32 %v298, %v304
      %v308 = vld [vmem:[%s2] sm:$0x1]
      %v310 = vlaneseq
      %v311 = vshrl.u32 %v310, 7
      %v312 = vsub.s32 0, %v311
      %v313 = vrot.slane %v308, %v312
      %v315 = vadd.f32 %v306, %v313
      %v316 = vadd.f32 %v307, %v313
      %v317 = vmax.f32 %v315, 0.0
      %v318 = vmax.f32 %v316, 0.0
      %v319 = vpack.c.bf16 %v318, %v317
      %v320 = vld [vmem:[%s3] sm:$0xf]
      %v321 = vld [vmem:[%s3 + $0x4] sm:$0xf]
      %v322 = vld [vmem:[%s3 + $0x8] sm:$0xf]
      %v323 = vld [vmem:[%s3 + $0xc] sm:$0xf]
      %v324 = vld [vmem:[%s3 + $0x10] sm:$0xf]
      %v325 = vld [vmem:[%s3 + $0x14] sm:$0xf]
      %v326 = vld [vmem:[%s3 + $0x18] sm:$0xf]
      %v327 = vld [vmem:[%s3 + $0x1c] sm:$0xf]
      %v328 = vld [vmem:[%s3 + $0x20] sm:$0xf]
      %v329 = vld [vmem:[%s3 + $0x24] sm:$0xf]
      %v330 = vld [vmem:[%s3 + $0x28] sm:$0xf]
      %v331 = vld [vmem:[%s3 + $0x2c] sm:$0xf]
      %v332 = vld [vmem:[%s3 + $0x30] sm:$0xf]
      %v333 = vld [vmem:[%s3 + $0x34] sm:$0xf]
      %v334 = vld [vmem:[%s3 + $0x38] sm:$0xf]
      %v335 = vld [vmem:[%s3 + $0x3c] sm:$0xf]
      %v352 = vunpack.c.l.b16 %v320
      %v353 = vunpack.c.l.b16 %v321
      %v354 = vunpack.c.l.b16 %v322
      %v355 = vunpack.c.l.b16 %v323
      %v356 = vunpack.c.l.b16 %v324
      %v357 = vunpack.c.l.b16 %v325
      %v358 = vunpack.c.l.b16 %v326
      %v359 = vunpack.c.l.b16 %v327
      %v360 = vunpack.c.l.b16 %v328
      %v361 = vunpack.c.l.b16 %v329
      %v362 = vunpack.c.l.b16 %v330
      %v363 = vunpack.c.l.b16 %v331
      %v364 = vunpack.c.l.b16 %v332
      %v365 = vunpack.c.l.b16 %v333
      %v366 = vunpack.c.l.b16 %v334
      %v367 = vunpack.c.l.b16 %v335
      %v368 = vpack.c.b16 %v353, %v352
      %v369 = vpack.c.b16 %v355, %v354
      %v370 = vpack.c.b16 %v357, %v356
      %v371 = vpack.c.b16 %v359, %v358
      %v372 = vpack.c.b16 %v361, %v360
      %v373 = vpack.c.b16 %v363, %v362
      %v374 = vpack.c.b16 %v365, %v364
      %v375 = vpack.c.b16 %v367, %v366
      %384 = vmatprep.subr.bf16.mxu0 0
      %385 = vmatpush1.bf16.msra.mxu0 %v375
      %386 = vmatprep.subr.bf16.mxu0 0
      %387 = vmatpush1.bf16.msra.mxu0 %v374
      %388 = vmatprep.subr.bf16.mxu0 0
      %389 = vmatpush1.bf16.msra.mxu0 %v373
      %390 = vmatprep.subr.bf16.mxu0 0
      %391 = vmatpush1.bf16.msra.mxu0 %v372
      %392 = vmatprep.subr.bf16.mxu0 0
      %393 = vmatpush1.bf16.msra.mxu0 %v371
      %394 = vmatprep.subr.bf16.mxu0 0
      %395 = vmatpush1.bf16.msra.mxu0 %v370
      %396 = vmatprep.subr.bf16.mxu0 0
      %397 = vmatpush1.bf16.msra.mxu0 %v369
      %398 = vmatprep.subr.bf16.mxu0 0
      %399 = vmatpush1.bf16.msra.mxu0 %v368
      %400 = vmatprep.subr.bf16.mxu0 0
      %401 = vmatpush2.bf16.msra.mxu0 0
      %402 = vmatprep.subr.bf16.mxu0 0
      %403 = vmatpush2.bf16.msra.mxu0 0
      %404 = vmatprep.subr.bf16.mxu0 0
      %405 = vmatpush2.bf16.msra.mxu0 0
      %406 = vmatprep.subr.bf16.mxu0 0
      %407 = vmatpush2.bf16.msra.mxu0 0
      %408 = vmatprep.subr.bf16.mxu0 0
      %409 = vmatpush2.bf16.msra.mxu0 0
      %410 = vmatprep.subr.bf16.mxu0 0
      %411 = vmatpush2.bf16.msra.mxu0 0
      %412 = vmatprep.subr.bf16.mxu0 0
      %413 = vmatpush2.bf16.msra.mxu0 0
      %414 = vmatprep.subr.bf16.mxu0 0
      %415 = vmatpush2.bf16.msra.mxu0 0
      %416 = vmatprep.mubr.bf16.mxu0 0
      %417 = vmatmul.mubr.bf16.gmra.mxu0 %v319
      %v418 = vpop.f32.mrf.mxu0
      %v419 = vadd.f32 0.0, %v418
      %v420 = vpop.f32.mrf.mxu0
      %v421 = vpop.f32.mrf.mxu0
      %v422 = vadd.f32 0.0, %v421
      %v423 = vpop.f32.mrf.mxu0
      %424 = vdwg.mxu0
      %s425 = scalar_lea.vmem %s3, 64
      %v426 = vld [vmem:[%s425] sm:$0xf]
      %v427 = vld [vmem:[%s425 + $0x4] sm:$0xf]
      %v428 = vld [vmem:[%s425 + $0x8] sm:$0xf]
      %v429 = vld [vmem:[%s425 + $0xc] sm:$0xf]
      %v430 = vld [vmem:[%s425 + $0x10] sm:$0xf]
      %v431 = vld [vmem:[%s425 + $0x14] sm:$0xf]
      %v432 = vld [vmem:[%s425 + $0x18] sm:$0xf]
      %v433 = vld [vmem:[%s425 + $0x1c] sm:$0xf]
      %v434 = vld [vmem:[%s425 + $0x20] sm:$0xf]
      %v435 = vld [vmem:[%s425 + $0x24] sm:$0xf]
      %v436 = vld [vmem:[%s425 + $0x28] sm:$0xf]
      %v437 = vld [vmem:[%s425 + $0x2c] sm:$0xf]
      %v438 = vld [vmem:[%s425 + $0x30] sm:$0xf]
      %v439 = vld [vmem:[%s425 + $0x34] sm:$0xf]
      %v440 = vld [vmem:[%s425 + $0x38] sm:$0xf]
      %v441 = vld [vmem:[%s425 + $0x3c] sm:$0xf]
      %s442 = scalar_lea.vmem %s3, 128
      %v443 = vld [vmem:[%s442] sm:$0xf]
      %v444 = vld [vmem:[%s442 + $0x4] sm:$0xf]
      %v445 = vld [vmem:[%s442 + $0x8] sm:$0xf]
      %v446 = vld [vmem:[%s442 + $0xc] sm:$0xf]
      %v447 = vld [vmem:[%s442 + $0x10] sm:$0xf]
      %v448 = vld [vmem:[%s442 + $0x14] sm:$0xf]
      %v449 = vld [vmem:[%s442 + $0x18] sm:$0xf]
      %v450 = vld [vmem:[%s442 + $0x1c] sm:$0xf]
      %v451 = vld [vmem:[%s442 + $0x20] sm:$0xf]
      %v452 = vld [vmem:[%s442 + $0x24] sm:$0xf]
      %v453 = vld [vmem:[%s442 + $0x28] sm:$0xf]
      %v454 = vld [vmem:[%s442 + $0x2c] sm:$0xf]
      %v455 = vld [vmem:[%s442 + $0x30] sm:$0xf]
      %v456 = vld [vmem:[%s442 + $0x34] sm:$0xf]
      %v457 = vld [vmem:[%s442 + $0x38] sm:$0xf]
      %v458 = vld [vmem:[%s442 + $0x3c] sm:$0xf]
      %v475 = vunpack.c.l.b16 %v443
      %v476 = vunpack.c.l.b16 %v444
      %v477 = vunpack.c.l.b16 %v445
      %v478 = vunpack.c.l.b16 %v446
      %v479 = vunpack.c.l.b16 %v447
      %v480 = vunpack.c.l.b16 %v448
      %v481 = vunpack.c.l.b16 %v449
      %v482 = vunpack.c.l.b16 %v450
      %v483 = vunpack.c.l.b16 %v451
      %v484 = vunpack.c.l.b16 %v452
      %v485 = vunpack.c.l.b16 %v453
      %v486 = vunpack.c.l.b16 %v454
      %v487 = vunpack.c.l.b16 %v455
      %v488 = vunpack.c.l.b16 %v456
      %v489 = vunpack.c.l.b16 %v457
      %v490 = vunpack.c.l.b16 %v458
      %v491 = vpack.c.b16 %v476, %v475
      %v492 = vpack.c.b16 %v478, %v477
      %v493 = vpack.c.b16 %v480, %v479
      %v494 = vpack.c.b16 %v482, %v481
      %v495 = vpack.c.b16 %v484, %v483
      %v496 = vpack.c.b16 %v486, %v485
      %v497 = vpack.c.b16 %v488, %v487
      %v498 = vpack.c.b16 %v490, %v489
      %507 = vmatprep.subr.bf16.mxu0 0
      %508 = vmatpush1.bf16.msra.mxu0 %v498
      %509 = vmatprep.subr.bf16.mxu0 0
      %510 = vmatpush1.bf16.msra.mxu0 %v497
      %511 = vmatprep.subr.bf16.mxu0 0
      %512 = vmatpush1.bf16.msra.mxu0 %v496
      %513 = vmatprep.subr.bf16.mxu0 0
      %514 = vmatpush1.bf16.msra.mxu0 %v495
      %515 = vmatprep.subr.bf16.mxu0 0
      %516 = vmatpush1.bf16.msra.mxu0 %v494
      %517 = vmatprep.subr.bf16.mxu0 0
      %518 = vmatpush1.bf16.msra.mxu0 %v493
      %519 = vmatprep.subr.bf16.mxu0 0
      %520 = vmatpush1.bf16.msra.mxu0 %v492
      %521 = vmatprep.subr.bf16.mxu0 0
      %522 = vmatpush1.bf16.msra.mxu0 %v491
      %523 = vmatprep.subr.bf16.mxu0 0
      %524 = vmatpush2.bf16.msra.mxu0 0
      %525 = vmatprep.subr.bf16.mxu0 0
      %526 = vmatpush2.bf16.msra.mxu0 0
      %527 = vmatprep.subr.bf16.mxu0 0
      %528 = vmatpush2.bf16.msra.mxu0 0
      %529 = vmatprep.subr.bf16.mxu0 0
      %530 = vmatpush2.bf16.msra.mxu0 0
      %531 = vmatprep.subr.bf16.mxu0 0
      %532 = vmatpush2.bf16.msra.mxu0 0
      %533 = vmatprep.subr.bf16.mxu0 0
      %534 = vmatpush2.bf16.msra.mxu0 0
      %535 = vmatprep.subr.bf16.mxu0 0
      %536 = vmatpush2.bf16.msra.mxu0 0
      %537 = vmatprep.subr.bf16.mxu0 0
      %538 = vmatpush2.bf16.msra.mxu0 0
      %539 = vmatprep.mubr.bf16.mxu0 0
      %540 = vmatmul.mubr.bf16.gmra.mxu0 %v319
      %v541 = vpop.f32.mrf.mxu0
      %v542 = vadd.f32 0.0, %v541
      %v543 = vpop.f32.mrf.mxu0
      %v544 = vpop.f32.mrf.mxu0
      %v545 = vadd.f32 0.0, %v544
      %v546 = vpop.f32.mrf.mxu0
      %547 = vdwg.mxu0
      %v548 = vlaneseq
      %v549 = vshrl.u32 %v548, 7
      %v550 = vadd.s32 %v549, 8
      %v551 = vlaneseq
      %v552 = vand.u32 %v551, 127
      %v553 = vadd.s32 %v552, 1
      %vm554 = vcmp.eq.s32.totalorder %v549, %v553
      %vm555 = vcmp.eq.s32.totalorder %v550, %v553
      %v556 = vsel %vm554, 1, 0
      %v557 = vsel %vm555, 1, 0
      %v558 = vcvt.s32.f32 %v556
      %v559 = vcvt.s32.f32 %v557
      %v560 = vsub.s32 %v552, 1
      %vm561 = vcmp.eq.s32.totalorder %v549, %v560
      %vm562 = vcmp.eq.s32.totalorder %v550, %v560
      %v563 = vsel %vm561, 1, 0
      %v564 = vsel %vm562, 1, 0
      %v565 = vcvt.s32.f32 %v563
      %v566 = vcvt.s32.f32 %v564
      %vm567 = vcmask 130048
      %v569 = vsel %vm567, %v558, 0
      %v572 = vsel %vm567, %v559, 0
      %574 = vmatprep.subr.mxu0 0.0
      %575 = vmatpush1.msra.mxu0 0.0
      %576 = vmatprep.subr.mxu0 0.0
      %577 = vmatpush1.msra.mxu0 0.0
      %578 = vmatprep.subr.mxu0 0.0
      %579 = vmatpush1.msra.mxu0 0.0
      %580 = vmatprep.subr.mxu0 0.0
      %581 = vmatpush1.msra.mxu0 0.0
      %582 = vmatprep.subr.mxu0 0.0
      %583 = vmatpush1.msra.mxu0 0.0
      %584 = vmatprep.subr.mxu0 0.0
      %585 = vmatpush1.msra.mxu0 0.0
      %586 = vmatprep.subr.mxu0 0.0
      %587 = vmatpush1.msra.mxu0 0.0
      %588 = vmatprep.subr.mxu0 0.0
      %589 = vmatpush1.msra.mxu0 0.0
      %590 = vmatprep.subr.mxu0 0.0
      %591 = vmatpush1.msra.mxu0 0.0
      %592 = vmatprep.subr.mxu0 0.0
      %593 = vmatpush1.msra.mxu0 0.0
      %594 = vmatprep.subr.mxu0 0.0
      %595 = vmatpush1.msra.mxu0 0.0
      %596 = vmatprep.subr.mxu0 0.0
      %597 = vmatpush1.msra.mxu0 0.0
      %598 = vmatprep.subr.mxu0 0.0
      %599 = vmatpush1.msra.mxu0 0.0
      %600 = vmatprep.subr.mxu0 0.0
      %601 = vmatpush1.msra.mxu0 0.0
      %602 = vmatprep.subr.mxu0 0.0
      %603 = vmatpush1.msra.mxu0 %v422
      %604 = vmatprep.subr.mxu0 0.0
      %605 = vmatpush1.msra.mxu0 %v419
      %606 = vmatprep.subr.mxu0 0.0
      %607 = vmatpush2.msra.mxu0 0.0
      %608 = vmatprep.subr.mxu0 0.0
      %609 = vmatpush2.msra.mxu0 0.0
      %610 = vmatprep.subr.mxu0 0.0
      %611 = vmatpush2.msra.mxu0 0.0
      %612 = vmatprep.subr.mxu0 0.0
      %613 = vmatpush2.msra.mxu0 0.0
      %614 = vmatprep.subr.mxu0 0.0
      %615 = vmatpush2.msra.mxu0 0.0
      %616 = vmatprep.subr.mxu0 0.0
      %617 = vmatpush2.msra.mxu0 0.0
      %618 = vmatprep.subr.mxu0 0.0
      %619 = vmatpush2.msra.mxu0 0.0
      %620 = vmatprep.subr.mxu0 0.0
      %621 = vmatpush2.msra.mxu0 0.0
      %622 = vmatprep.subr.mxu0 0.0
      %623 = vmatpush2.msra.mxu0 0.0
      %624 = vmatprep.subr.mxu0 0.0
      %625 = vmatpush2.msra.mxu0 0.0
      %626 = vmatprep.subr.mxu0 0.0
      %627 = vmatpush2.msra.mxu0 0.0
      %628 = vmatprep.subr.mxu0 0.0
      %629 = vmatpush2.msra.mxu0 0.0
      %630 = vmatprep.subr.mxu0 0.0
      %631 = vmatpush2.msra.mxu0 0.0
      %632 = vmatprep.subr.mxu0 0.0
      %633 = vmatpush2.msra.mxu0 0.0
      %634 = vmatprep.subr.mxu0 0.0
      %635 = vmatpush2.msra.mxu0 0.0
      %636 = vmatprep.subr.mxu0 0.0
      %637 = vmatpush2.msra.mxu0 0.0
      %638 = vmatprep.mubr.f32.mxu0 0.0
      %639 = vmatmul.mubr.f32.gmra.mxu0 %v569
      %v640 = vpop.f32.mrf.mxu0
      %v641 = vadd.f32 0.0, %v640
      %v642 = vpop.f32.mrf.mxu0
      %643 = vmatprep.mubr.f32.mxu0 0.0
      %644 = vmatmul.mubr.f32.gmra.mxu0 %v572
      %v645 = vpop.f32.mrf.mxu0
      %v646 = vadd.f32 0.0, %v645
      %v647 = vpop.f32.mrf.mxu0
      %648 = vdwg.mxu0
      %v665 = vunpack.c.l.b16 %v426
      %v666 = vunpack.c.l.b16 %v427
      %v667 = vunpack.c.l.b16 %v428
      %v668 = vunpack.c.l.b16 %v429
      %v669 = vunpack.c.l.b16 %v430
      %v670 = vunpack.c.l.b16 %v431
      %v671 = vunpack.c.l.b16 %v432
      %v672 = vunpack.c.l.b16 %v433
      %v673 = vunpack.c.l.b16 %v434
      %v674 = vunpack.c.l.b16 %v435
      %v675 = vunpack.c.l.b16 %v436
      %v676 = vunpack.c.l.b16 %v437
      %v677 = vunpack.c.l.b16 %v438
      %v678 = vunpack.c.l.b16 %v439
      %v679 = vunpack.c.l.b16 %v440
      %v680 = vunpack.c.l.b16 %v441
      %v681 = vpack.c.b16 %v666, %v665
      %v682 = vpack.c.b16 %v668, %v667
      %v683 = vpack.c.b16 %v670, %v669
      %v684 = vpack.c.b16 %v672, %v671
      %v685 = vpack.c.b16 %v674, %v673
      %v686 = vpack.c.b16 %v676, %v675
      %v687 = vpack.c.b16 %v678, %v677
      %v688 = vpack.c.b16 %v680, %v679
      %697 = vmatprep.subr.bf16.mxu0 0
      %698 = vmatpush1.bf16.msra.mxu0 %v688
      %699 = vmatprep.subr.bf16.mxu0 0
      %700 = vmatpush1.bf16.msra.mxu0 %v687
      %701 = vmatprep.subr.bf16.mxu0 0
      %702 = vmatpush1.bf16.msra.mxu0 %v686
      %703 = vmatprep.subr.bf16.mxu0 0
      %704 = vmatpush1.bf16.msra.mxu0 %v685
      %705 = vmatprep.subr.bf16.mxu0 0
      %706 = vmatpush1.bf16.msra.mxu0 %v684
      %707 = vmatprep.subr.bf16.mxu0 0
      %708 = vmatpush1.bf16.msra.mxu0 %v683
      %709 = vmatprep.subr.bf16.mxu0 0
      %710 = vmatpush1.bf16.msra.mxu0 %v682
      %711 = vmatprep.subr.bf16.mxu0 0
      %712 = vmatpush1.bf16.msra.mxu0 %v681
      %713 = vmatprep.subr.bf16.mxu0 0
      %714 = vmatpush2.bf16.msra.mxu0 0
      %715 = vmatprep.subr.bf16.mxu0 0
      %716 = vmatpush2.bf16.msra.mxu0 0
      %717 = vmatprep.subr.bf16.mxu0 0
      %718 = vmatpush2.bf16.msra.mxu0 0
      %719 = vmatprep.subr.bf16.mxu0 0
      %720 = vmatpush2.bf16.msra.mxu0 0
      %721 = vmatprep.subr.bf16.mxu0 0
      %722 = vmatpush2.bf16.msra.mxu0 0
      %723 = vmatprep.subr.bf16.mxu0 0
      %724 = vmatpush2.bf16.msra.mxu0 0
      %725 = vmatprep.subr.bf16.mxu0 0
      %726 = vmatpush2.bf16.msra.mxu0 0
      %727 = vmatprep.subr.bf16.mxu0 0
      %728 = vmatpush2.bf16.msra.mxu0 0
      %729 = vmatprep.mubr.bf16.mxu0 0
      %730 = vmatmul.mubr.bf16.gmra.mxu0 %v319
      %v731 = vpop.f32.mrf.mxu0
      %v732 = vadd.f32 %v641, %v731
      %v733 = vpop.f32.mrf.mxu0
      %v734 = vpop.f32.mrf.mxu0
      %v735 = vadd.f32 %v646, %v734
      %v736 = vpop.f32.mrf.mxu0
      %737 = vdwg.mxu0
      %v739 = vsel %vm567, %v565, 0
      %v742 = vsel %vm567, %v566, 0
      %744 = vmatprep.subr.mxu0 0.0
      %745 = vmatpush1.msra.mxu0 0.0
      %746 = vmatprep.subr.mxu0 0.0
      %747 = vmatpush1.msra.mxu0 0.0
      %748 = vmatprep.subr.mxu0 0.0
      %749 = vmatpush1.msra.mxu0 0.0
      %750 = vmatprep.subr.mxu0 0.0
      %751 = vmatpush1.msra.mxu0 0.0
      %752 = vmatprep.subr.mxu0 0.0
      %753 = vmatpush1.msra.mxu0 0.0
      %754 = vmatprep.subr.mxu0 0.0
      %755 = vmatpush1.msra.mxu0 0.0
      %756 = vmatprep.subr.mxu0 0.0
      %757 = vmatpush1.msra.mxu0 0.0
      %758 = vmatprep.subr.mxu0 0.0
      %759 = vmatpush1.msra.mxu0 0.0
      %760 = vmatprep.subr.mxu0 0.0
      %761 = vmatpush1.msra.mxu0 0.0
      %762 = vmatprep.subr.mxu0 0.0
      %763 = vmatpush1.msra.mxu0 0.0
      %764 = vmatprep.subr.mxu0 0.0
      %765 = vmatpush1.msra.mxu0 0.0
      %766 = vmatprep.subr.mxu0 0.0
      %767 = vmatpush1.msra.mxu0 0.0
      %768 = vmatprep.subr.mxu0 0.0
      %769 = vmatpush1.msra.mxu0 0.0
      %770 = vmatprep.subr.mxu0 0.0
      %771 = vmatpush1.msra.mxu0 0.0
      %772 = vmatprep.subr.mxu0 0.0
      %773 = vmatpush1.msra.mxu0 %v545
      %774 = vmatprep.subr.mxu0 0.0
      %775 = vmatpush1.msra.mxu0 %v542
      %776 = vmatprep.subr.mxu0 0.0
      %777 = vmatpush2.msra.mxu0 0.0
      %778 = vmatprep.subr.mxu0 0.0
      %779 = vmatpush2.msra.mxu0 0.0
      %780 = vmatprep.subr.mxu0 0.0
      %781 = vmatpush2.msra.mxu0 0.0
      %782 = vmatprep.subr.mxu0 0.0
      %783 = vmatpush2.msra.mxu0 0.0
      %784 = vmatprep.subr.mxu0 0.0
      %785 = vmatpush2.msra.mxu0 0.0
      %786 = vmatprep.subr.mxu0 0.0
      %787 = vmatpush2.msra.mxu0 0.0
      %788 = vmatprep.subr.mxu0 0.0
      %789 = vmatpush2.msra.mxu0 0.0
      %790 = vmatprep.subr.mxu0 0.0
      %791 = vmatpush2.msra.mxu0 0.0
      %792 = vmatprep.subr.mxu0 0.0
      %793 = vmatpush2.msra.mxu0 0.0
      %794 = vmatprep.subr.mxu0 0.0
      %795 = vmatpush2.msra.mxu0 0.0
      %796 = vmatprep.subr.mxu0 0.0
      %797 = vmatpush2.msra.mxu0 0.0
      %798 = vmatprep.subr.mxu0 0.0
      %799 = vmatpush2.msra.mxu0 0.0
      %800 = vmatprep.subr.mxu0 0.0
      %801 = vmatpush2.msra.mxu0 0.0
      %802 = vmatprep.subr.mxu0 0.0
      %803 = vmatpush2.msra.mxu0 0.0
      %804 = vmatprep.subr.mxu0 0.0
      %805 = vmatpush2.msra.mxu0 0.0
      %806 = vmatprep.subr.mxu0 0.0
      %807 = vmatpush2.msra.mxu0 0.0
      %808 = vmatprep.mubr.f32.mxu0 0.0
      %809 = vmatmul.mubr.f32.gmra.mxu0 %v739
      %v810 = vpop.f32.mrf.mxu0
      %v811 = vadd.f32 0.0, %v810
      %v812 = vpop.f32.mrf.mxu0
      %813 = vmatprep.mubr.f32.mxu0 0.0
      %814 = vmatmul.mubr.f32.gmra.mxu0 %v742
      %v815 = vpop.f32.mrf.mxu0
      %v816 = vadd.f32 0.0, %v815
      %v817 = vpop.f32.mrf.mxu0
      %818 = vdwg.mxu0
      %v819 = vadd.f32 %v732, %v811
      %v820 = vadd.f32 %v735, %v816
      %v821 = vld [vmem:[%s4] sm:$0x1]
      %v823 = vlaneseq
      %v824 = vshrl.u32 %v823, 7
      %v825 = vsub.s32 0, %v824
      %v826 = vrot.slane %v821, %v825
      %v828 = vadd.f32 %v819, %v826
      %v829 = vadd.f32 %v820, %v826
      %830 = vst [vmem:[%s289] sm:$0xff] %v828
      %831 = vst [vmem:[%s289 + $0x8] sm:$0xff] %v829
      %v832 = vadd.f32 %v828, %v829
      %v833 = vrot.slane %v832, 4
      %v834 = vadd.f32 %v832, %v833
      %v835 = vrot.slane %v834, 2
      %v836 = vadd.f32 %v834, %v835
      %v837 = vrot.slane %v836, 1
      %v838 = vadd.f32 %v836, %v837
      %839 = vst [vmem:[%s292] sm:$0x1] %v838
      %v840 = vmul.f32 %v828, %v828
      %v841 = vmul.f32 %v829, %v829
      %v842 = vadd.f32 %v840, %v841
      %v843 = vrot.slane %v842, 4
      %v844 = vadd.f32 %v842, %v843
      %v845 = vrot.slane %v844, 2
      %v846 = vadd.f32 %v844, %v845
      %v847 = vrot.slane %v846, 1
      %v848 = vadd.f32 %v846, %v847
      %849 = vst [vmem:[%s295] sm:$0x1] %v848
      %p850 = scmp.lt.s32.totalorder %s19, 1
      %s851 = scalar_select %p850, %s19, 1
      %s852 = smul.addr %s851, 2
      %s853 = smul.addr %s852, 8
      %s854 = scalar_lea.vmem %s5, %s853
      %p855 = scmp.lt.s32.totalorder %s19, 1
      %s856 = scalar_select %p855, %s19, 1
      %s857 = scalar_lea.vmem %s6, %s856
      %p858 = scmp.lt.s32.totalorder %s19, 1
      %s859 = scalar_select %p858, %s19, 1
      %s860 = scalar_lea.vmem %s7, %s859
      // Predicated region
      $region41: #{residual_forward.4} parent=39 // pred_check
        %p861 = pneg %p147
      $region42: #{residual_forward.4} parent=39 // pred_check_branch
        %863 = sbr.rel (%p861) target = $region44
      $region43: #{residual_forward.4} parent=39 // pred_region
        _
      $region44: #{residual_forward.4} parent=39 // pred_fallthru
        _
      // Predicated region
      $region45: #{residual_forward.4} parent=39 // pred_check
        %p864 = pneg %p173
      $region46: #{residual_forward.4} parent=39 // pred_check_branch
        %866 = sbr.rel (%p864) target = $region48
      $region47: #{residual_forward.4} parent=39 // pred_region
        _
      $region48: #{residual_forward.4} parent=39 // pred_fallthru
        _
      // Predicated region
      $region49: #{residual_forward.4} parent=39 // pred_check
        %p867 = pneg %p199
      $region50: #{residual_forward.4} parent=39 // pred_check_branch
        %869 = sbr.rel (%p867) target = $region52
      $region51: #{residual_forward.4} parent=39 // pred_region
        _
      $region52: #{residual_forward.4} parent=39 // pred_fallthru
        _
    $region40: #{residual_forward.4} parent=5 // pred_fallthru
      _
    %p870 = scmp.le.s32.totalorder 2, %s14
    // Predicated region
    $region53: #{residual_forward.4} parent=5 // pred_check
      %p871 = pneg %p870
    $region54: #{residual_forward.4} parent=5 // pred_check_branch
      %873 = sbr.rel (%p871) target = $region56
    $region55: #{residual_forward.4} parent=5 // pred_region
      %s874 = ssub.s32 %s14, 2
      // Predicated region
      $region57: #{residual_forward.4} parent=55 // pred_check
        %p875 = pneg %p153
      $region58: #{residual_forward.4} parent=55 // pred_check_branch
        %877 = sbr.rel (%p875) target = $region60
      $region59: #{residual_forward.4} parent=55 // pred_region
        %p878 = scmp.lt.s32.totalorder %s20, 1
        %s879 = scalar_select %p878, %s20, 1
        %s880 = smul.addr %s879, 2
        %s881 = smul.addr %s880, 8
        %s882 = scalar_lea.vmem %s5, %s881
      $region60: #{residual_forward.4} parent=55 // pred_fallthru
        _
      // Predicated region
      $region61: #{residual_forward.4} parent=55 // pred_check
        %p883 = pneg %p179
      $region62: #{residual_forward.4} parent=55 // pred_check_branch
        %885 = sbr.rel (%p883) target = $region64
      $region63: #{residual_forward.4} parent=55 // pred_region
        %p886 = scmp.lt.s32.totalorder %s20, 1
        %s887 = scalar_select %p886, %s20, 1
        %s888 = scalar_lea.vmem %s6, %s887
      $region64: #{residual_forward.4} parent=55 // pred_fallthru
        _
      // Predicated region
      $region65: #{residual_forward.4} parent=55 // pred_check
        %p889 = pneg %p205
      $region66: #{residual_forward.4} parent=55 // pred_check_branch
        %891 = sbr.rel (%p889) target = $region68
      $region67: #{residual_forward.4} parent=55 // pred_region
        %p892 = scmp.lt.s32.totalorder %s20, 1
        %s893 = scalar_select %p892, %s20, 1
        %s894 = scalar_lea.vmem %s7, %s893
      $region68: #{residual_forward.4} parent=55 // pred_fallthru
        _
    $region56: #{residual_forward.4} parent=5 // pred_fallthru
      _
  $region6: #{residual_forward.4} parent=0 // loop_footer
    %s18 = sadd.s32 1, %s14
  $region7: #{residual_forward.4} parent=0 // loop_footer_branch
    %13 = sbr.rel target = $region3
  $region8: #{residual_forward.4} parent=0 // loop_exit
    _

// kernel: residual_forward.5
$region0: #{residual_forward.5}
  #allocation0 [shape = 'u32[]', space=smem, size = 0x4, offset = 0x4, fixed_abs, tag = 'smem constant byte address 0x4 - core index']
  #allocation1 [shape = 'u32[144,128]{1,0:T(1,128)}', space=vmem, size = 0x12000, scoped, tag = 'internal scratch']
  %s0 = inlined_call_operand.vmem [shape: f32[2,16,128], index: 0, kind: input, shape index: {}]
  %s1 = inlined_call_operand.vmem [shape: f32[2,16,64], index: 1, kind: input, shape index: {}]
  %s2 = inlined_call_operand.vmem [shape: bf16[64,128], index: 2, kind: input, shape index: {}]
  %s3 = inlined_call_operand.vmem [shape: f32[1,128], index: 3, kind: input, shape index: {}]
  %s4 = inlined_call_operand.vmem [shape: f32[1,128], index: 4, kind: input, shape index: {}]
  %s5 = inlined_call_operand.vmem [shape: f32[1,128], index: 5, kind: input, shape index: {}]
  %s6 = inlined_call_operand.vmem [shape: f32[2,16,128], index: 6, kind: output, shape index: {}]
  %s7 = sld [smem:[#allocation0]]
  $region57: #{residual_forward.5} parent=0
    _
  %s9 = ssub.s32 1, %s7
  %s10 = scalar_select 0, %s9, %s7
  loop: start=0, step=1, limit=4
  $region2: #{residual_forward.5} parent=0 // loop_pre_header
    _
  $region3: #{residual_forward.5} parent=0 // loop_header
    %s12 = sphi 0, %s16
    %p13 = scmp.ge.s32.totalorder %s12, 4
    %s22 = sphi 0, %s24
    %s25 = sphi 0, %s22
    %s26 = sphi 0, %s25
    %s42 = sphi 0, %s26
    %s48 = sphi 0, %s50
    %s51 = sphi 0, %s48
    %s52 = sphi 0, %s51
    %s68 = sphi 0, %s52
    %s72 = sphi 0, %s72
    %s74 = sphi 0, %s72
    %s75 = sphi 0, %s74
    %s89 = sphi 0, %s75
    %s93 = sphi 0, %s93
    %s95 = sphi 0, %s93
    %s96 = sphi 0, %s95
    %s110 = sphi 0, %s96
    %s114 = sphi 0, %s114
    %s116 = sphi 0, %s114
    %s117 = sphi 0, %s116
    %s131 = sphi 0, %s117
    %s135 = sphi 0, %s135
    %s137 = sphi 0, %s135
    %s138 = sphi 0, %s137
    %s152 = sphi 0, %s138
    %s158 = sphi 0, %s160
    %s161 = sphi 0, %s158
    %s162 = sphi 0, %s161
    %s178 = sphi 0, %s162
  $region4: #{residual_forward.5} parent=0 // loop_header_branch
    %15 = sbr.rel (%p13) target = $region8
  $region5: #{residual_forward.5} parent=0 // loop_body
    %s17 = ssub.s32 %s12, 1
    %s18 = ssub.s32 %s12, 2
    %s19 = sadd.s32 %s12, 1
    %s20 = ssub.s32 %s12, %s19
    %p21 = scmp.eq.s32.totalorder %s20, 0
    %s23 = sadd.s32 %s22, 1
    %s24 = scalar_select %p21, %s22, %s23
    %p27 = pneg %p21
    %p28 = scmp.eq.s32.totalorder %s12, 1
    %p29 = por %p27, %p28
    %p30 = scmp.ne.s32.totalorder %s22, %s25
    %p31 = scmp.eq.s32.totalorder %s12, 0
    %p32 = por %p30, %p31
    %p33 = scmp.ne.s32.totalorder %s22, %s25
    %p34 = scmp.eq.s32.totalorder %s17, 1
    %p35 = por %p33, %p34
    %p36 = scmp.ne.s32.totalorder %s25, %s26
    %p37 = scmp.eq.s32.totalorder %s17, 0
    %p38 = por %p36, %p37
    %p39 = scmp.ne.s32.totalorder %s25, %s26
    %p40 = scmp.eq.s32.totalorder %s18, 1
    %p41 = por %p39, %p40
    %p43 = scmp.ne.s32.totalorder %s26, %s42
    %p44 = scmp.eq.s32.totalorder %s18, 0
    %p45 = por %p43, %p44
    %s46 = ssub.s32 %s12, %s19
    %p47 = scmp.eq.s32.totalorder %s46, 0
    %s49 = sadd.s32 %s48, 1
    %s50 = scalar_select %p47, %s48, %s49
    %p53 = pneg %p47
    %p54 = scmp.eq.s32.totalorder %s12, 1
    %p55 = por %p53, %p54
    %p56 = scmp.ne.s32.totalorder %s48, %s51
    %p57 = scmp.eq.s32.totalorder %s12, 0
    %p58 = por %p56, %p57
    %p59 = scmp.ne.s32.totalorder %s48, %s51
    %p60 = scmp.eq.s32.totalorder %s17, 1
    %p61 = por %p59, %p60
    %p62 = scmp.ne.s32.totalorder %s51, %s52
    %p63 = scmp.eq.s32.totalorder %s17, 0
    %p64 = por %p62, %p63
    %p65 = scmp.ne.s32.totalorder %s51, %s52
    %p66 = scmp.eq.s32.totalorder %s18, 1
    %p67 = por %p65, %p66
    %p69 = scmp.ne.s32.totalorder %s52, %s68
    %p70 = scmp.eq.s32.totalorder %s18, 0
    %p71 = por %p69, %p70
    %s73 = sadd.s32 %s72, 1
    %p76 = scmp.eq.s32.totalorder %s12, 1
    %p77 = scmp.ne.s32.totalorder %s72, %s74
    %p78 = scmp.eq.s32.totalorder %s12, 0
    %p79 = por %p77, %p78
    %p80 = scmp.ne.s32.totalorder %s72, %s74
    %p81 = scmp.eq.s32.totalorder %s17, 1
    %p82 = por %p80, %p81
    %p83 = scmp.ne.s32.totalorder %s74, %s75
    %p84 = scmp.eq.s32.totalorder %s17, 0
    %p85 = por %p83, %p84
    %p86 = scmp.ne.s32.totalorder %s74, %s75
    %p87 = scmp.eq.s32.totalorder %s18, 1
    %p88 = por %p86, %p87
    %p90 = scmp.ne.s32.totalorder %s75, %s89
    %p91 = scmp.eq.s32.totalorder %s18, 0
    %p92 = por %p90, %p91
    %s94 = sadd.s32 %s93, 1
    %p97 = scmp.eq.s32.totalorder %s12, 1
    %p98 = scmp.ne.s32.totalorder %s93, %s95
    %p99 = scmp.eq.s32.totalorder %s12, 0
    %p100 = por %p98, %p99
    %p101 = scmp.ne.s32.totalorder %s93, %s95
    %p102 = scmp.eq.s32.totalorder %s17, 1
    %p103 = por %p101, %p102
    %p104 = scmp.ne.s32.totalorder %s95, %s96
    %p105 = scmp.eq.s32.totalorder %s17, 0
    %p106 = por %p104, %p105
    %p107 = scmp.ne.s32.totalorder %s95, %s96
    %p108 = scmp.eq.s32.totalorder %s18, 1
    %p109 = por %p107, %p108
    %p111 = scmp.ne.s32.totalorder %s96, %s110
    %p112 = scmp.eq.s32.totalorder %s18, 0
    %p113 = por %p111, %p112
    %s115 = sadd.s32 %s114, 1
    %p118 = scmp.eq.s32.totalorder %s12, 1
    %p119 = scmp.ne.s32.totalorder %s114, %s116
    %p120 = scmp.eq.s32.totalorder %s12, 0
    %p121 = por %p119, %p120
    %p122 = scmp.ne.s32.totalorder %s114, %s116
    %p123 = scmp.eq.s32.totalorder %s17, 1
    %p124 = por %p122, %p123
    %p125 = scmp.ne.s32.totalorder %s116, %s117
    %p126 = scmp.eq.s32.totalorder %s17, 0
    %p127 = por %p125, %p126
    %p128 = scmp.ne.s32.totalorder %s116, %s117
    %p129 = scmp.eq.s32.totalorder %s18, 1
    %p130 = por %p128, %p129
    %p132 = scmp.ne.s32.totalorder %s117, %s131
    %p133 = scmp.eq.s32.totalorder %s18, 0
    %p134 = por %p132, %p133
    %s136 = sadd.s32 %s135, 1
    %p139 = scmp.eq.s32.totalorder %s12, 1
    %p140 = scmp.ne.s32.totalorder %s135, %s137
    %p141 = scmp.eq.s32.totalorder %s12, 0
    %p142 = por %p140, %p141
    %p143 = scmp.ne.s32.totalorder %s135, %s137
    %p144 = scmp.eq.s32.totalorder %s17, 1
    %p145 = por %p143, %p144
    %p146 = scmp.ne.s32.totalorder %s137, %s138
    %p147 = scmp.eq.s32.totalorder %s17, 0
    %p148 = por %p146, %p147
    %p149 = scmp.ne.s32.totalorder %s137, %s138
    %p150 = scmp.eq.s32.totalorder %s18, 1
    %p151 = por %p149, %p150
    %p153 = scmp.ne.s32.totalorder %s138, %s152
    %p154 = scmp.eq.s32.totalorder %s18, 0
    %p155 = por %p153, %p154
    %s156 = ssub.s32 %s12, %s19
    %p157 = scmp.eq.s32.totalorder %s156, 0
    %s159 = sadd.s32 %s158, 1
    %s160 = scalar_select %p157, %s158, %s159
    %p163 = pneg %p157
    %p164 = scmp.eq.s32.totalorder %s12, 1
    %p165 = por %p163, %p164
    %p166 = scmp.ne.s32.totalorder %s158, %s161
    %p167 = scmp.eq.s32.totalorder %s12, 0
    %p168 = por %p166, %p167
    %p169 = scmp.ne.s32.totalorder %s158, %s161
    %p170 = scmp.eq.s32.totalorder %s17, 1
    %p171 = por %p169, %p170
    %p172 = scmp.ne.s32.totalorder %s161, %s162
    %p173 = scmp.eq.s32.totalorder %s17, 0
    %p174 = por %p172, %p173
    %p175 = scmp.ne.s32.totalorder %s161, %s162
    %p176 = scmp.eq.s32.totalorder %s18, 1
    %p177 = por %p175, %p176
    %p179 = scmp.ne.s32.totalorder %s162, %s178
    %p180 = scmp.eq.s32.totalorder %s18, 0
    %p181 = por %p179, %p180
    %p182 = scmp.le.s32.totalorder 1, %s12
    %p183 = scmp.lt.s32.totalorder %s12, 3
    %p184 = pnand %p182, %p183
    %p185 = pneg %p184
    // Predicated region
    $region9: #{residual_forward.5} parent=5 // pred_check
      _
    $region10: #{residual_forward.5} parent=5 // pred_check_branch
      %187 = sbr.rel (%p184) target = $region12
    $region11: #{residual_forward.5} parent=5 // pred_region
      %s188 = ssub.s32 %s12, 1
      // Predicated region
      $region13: #{residual_forward.5} parent=11 // pred_check
        %p189 = pneg %p85
      $region14: #{residual_forward.5} parent=11 // pred_check_branch
        %191 = sbr.rel (%p189) target = $region16
      $region15: #{residual_forward.5} parent=11 // pred_region
        _
      $region16: #{residual_forward.5} parent=11 // pred_fallthru
        _
      // Predicated region
      $region17: #{residual_forward.5} parent=11 // pred_check
        %p192 = pneg %p106
      $region18: #{residual_forward.5} parent=11 // pred_check_branch
        %194 = sbr.rel (%p192) target = $region20
      $region19: #{residual_forward.5} parent=11 // pred_region
        _
      $region20: #{residual_forward.5} parent=11 // pred_fallthru
        _
      // Predicated region
      $region21: #{residual_forward.5} parent=11 // pred_check
        %p195 = pneg %p127
      $region22: #{residual_forward.5} parent=11 // pred_check_branch
        %197 = sbr.rel (%p195) target = $region24
      $region23: #{residual_forward.5} parent=11 // pred_region
        _
      $region24: #{residual_forward.5} parent=11 // pred_fallthru
        _
      // Predicated region
      $region25: #{residual_forward.5} parent=11 // pred_check
        %p198 = pneg %p148
      $region26: #{residual_forward.5} parent=11 // pred_check_branch
        %200 = sbr.rel (%p198) target = $region28
      $region27: #{residual_forward.5} parent=11 // pred_region
        _
      $region28: #{residual_forward.5} parent=11 // pred_fallthru
        _
    $region12: #{residual_forward.5} parent=5 // pred_fallthru
      _
    %p201 = scmp.lt.s32.totalorder %s12, 2
    // Predicated region
    $region29: #{residual_forward.5} parent=5 // pred_check
      %p202 = pneg %p201
    $region30: #{residual_forward.5} parent=5 // pred_check_branch
      %204 = sbr.rel (%p202) target = $region32
    $region31: #{residual_forward.5} parent=5 // pred_region
      // Predicated region
      $region33: #{residual_forward.5} parent=31 // pred_check
        %p205 = pneg %p32
      $region34: #{residual_forward.5} parent=31 // pred_check_branch
        %207 = sbr.rel (%p205) target = $region36
      $region35: #{residual_forward.5} parent=31 // pred_region
        %p208 = scmp.lt.s32.totalorder %s12, 1
        %s209 = scalar_select %p208, %s12, 1
        %s210 = smul.addr %s209, 2
        %s211 = smul.addr %s210, 8
        %s212 = scalar_lea.vmem %s0, %s211
      $region36: #{residual_forward.5} parent=31 // pred_fallthru
        _
      // Predicated region
      $region37: #{residual_forward.5} parent=31 // pred_check
        %p213 = pneg %p58
      $region38: #{residual_forward.5} parent=31 // pred_check_branch
        %215 = sbr.rel (%p213) target = $region40
      $region39: #{residual_forward.5} parent=31 // pred_region
        %p216 = scmp.lt.s32.totalorder %s12, 1
        %s217 = scalar_select %p216, %s12, 1
        %s218 = smul.addr %s217, 2
        %s219 = smul.addr %s218, 8
        %s220 = scalar_lea.vmem %s1, %s219
      $region40: #{residual_forward.5} parent=31 // pred_fallthru
        _
    $region32: #{residual_forward.5} parent=5 // pred_fallthru
      _
    %p221 = scmp.le.s32.totalorder 1, %s12
    %p222 = scmp.lt.s32.totalorder %s12, 3
    %p223 = pnand %p221, %p222
    %p224 = pneg %p223
    // Predicated region
    $region41: #{residual_forward.5} parent=5 // pred_check
      _
    $region42: #{residual_forward.5} parent=5 // pred_check_branch
      %226 = sbr.rel (%p223) target = $region44
    $region43: #{residual_forward.5} parent=5 // pred_region
      %s227 = ssub.s32 %s12, 1
      %p228 = scmp.lt.s32.totalorder %s17, 1
      %s229 = scalar_select %p228, %s17, 1
      %s230 = smul.addr %s229, 2
      %s231 = smul.addr %s230, 8
      %s232 = scalar_lea.vmem %s0, %s231
      %p233 = pneg %p38
      %p234 = pneg %p35
      %p235 = scmp.lt.s32.totalorder %s17, 1
      %s236 = scalar_select %p235, %s17, 1
      %s237 = smul.addr %s236, 2
      %s238 = smul.addr %s237, 8
      %s239 = scalar_lea.vmem %s1, %s238
      %p240 = pneg %p64
      %p241 = pneg %p61
      %p242 = pneg %p85
      %p243 = pneg %p82
      %p244 = pneg %p106
      %p245 = pneg %p103
      %p246 = pneg %p127
      %p247 = pneg %p124
      %p248 = pneg %p148
      %p249 = pneg %p145
      %p250 = pneg %p174
      %p251 = pneg %p171
      %p252 = scmp.lt.s32.totalorder %s17, 1
      %s253 = scalar_select %p252, %s17, 1
      %s254 = smul.addr %s253, 2
      %s255 = smul.addr %s254, 8
      %s256 = scalar_lea.vmem %s6, %s255
      %p257 = scmp.lt.s32.totalorder %s17, 1
      %s258 = scalar_select %p257, %s17, 1
      %s259 = smul.addr %s258, 2
      %s260 = smul.addr %s259, 8
      %s261 = scalar_lea.vmem %s0, %s260
      %p262 = scmp.lt.s32.totalorder %s17, 1
      %s263 = scalar_select %p262, %s17, 1
      %s264 = smul.addr %s263, 2
      %s265 = smul.addr %s264, 8
      %s266 = scalar_lea.vmem %s1, %s265
      %p267 = scmp.lt.s32.totalorder %s17, 1
      %s268 = scalar_select %p267, %s17, 1
      %s269 = smul.addr %s268, 2
      %s270 = smul.addr %s269, 8
      %s271 = scalar_lea.vmem %s6, %s270
      %v273 = vld [vmem:[%s266] sm:$0xff]
      %v274 = vld [vmem:[%s266 + $0x8] sm:$0xff]
      %v275 = vpack.c.bf16 %v274, %v273
      %v276 = vld [vmem:[%s2] sm:$0xf]
      %v277 = vld [vmem:[%s2 + $0x4] sm:$0xf]
      %v278 = vld [vmem:[%s2 + $0x8] sm:$0xf]
      %v279 = vld [vmem:[%s2 + $0xc] sm:$0xf]
      %v280 = vld [vmem:[%s2 + $0x10] sm:$0xf]
      %v281 = vld [vmem:[%s2 + $0x14] sm:$0xf]
      %v282 = vld [vmem:[%s2 + $0x18] sm:$0xf]
      %v283 = vld [vmem:[%s2 + $0x1c] sm:$0xf]
      %v284 = vld [vmem:[%s3] sm:$0x1]
      %v286 = vlaneseq
      %v287 = vshrl.u32 %v286, 7
      %v288 = vsub.s32 0, %v287
      %v289 = vrot.slane %v284, %v288
      %v299 = vunpack.c.l.b16 %v276
      %v300 = vunpack.c.l.b16 %v277
      %v301 = vunpack.c.l.b16 %v278
      %v302 = vunpack.c.l.b16 %v279
      %v303 = vunpack.c.l.b16 %v280
      %v304 = vunpack.c.l.b16 %v281
      %v305 = vunpack.c.l.b16 %v282
      %v306 = vunpack.c.l.b16 %v283
      %v307 = vpack.c.b16 %v300, %v299
      %v308 = vpack.c.b16 %v302, %v301
      %v309 = vpack.c.b16 %v304, %v303
      %v310 = vpack.c.b16 %v306, %v305
      %vm315 = vcmask 523264
      %v317 = vsel %vm315, %v275, 0
      %319 = vmatprep.subr.bf16.mxu0 0
      %320 = vmatpush1.bf16.msra.mxu0 0
      %321 = vmatprep.subr.bf16.mxu0 0
      %322 = vmatpush1.bf16.msra.mxu0 0
      %323 = vmatprep.subr.bf16.mxu0 0
      %324 = vmatpush1.bf16.msra.mxu0 0
      %325 = vmatprep.subr.bf16.mxu0 0
      %326 = vmatpush1.bf16.msra.mxu0 0
      %327 = vmatprep.subr.bf16.mxu0 0
      %328 = vmatpush1.bf16.msra.mxu0 %v310
      %329 = vmatprep.subr.bf16.mxu0 0
      %330 = vmatpush1.bf16.msra.mxu0 %v309
      %331 = vmatprep.subr.bf16.mxu0 0
      %332 = vmatpush1.bf16.msra.mxu0 %v308
      %333 = vmatprep.subr.bf16.mxu0 0
      %334 = vmatpush1.bf16.msra.mxu0 %v307
      %335 = vmatprep.subr.bf16.mxu0 0
      %336 = vmatpush2.bf16.msra.mxu0 0
      %337 = vmatprep.subr.bf16.mxu0 0
      %338 = vmatpush2.bf16.msra.mxu0 0
      %339 = vmatprep.subr.bf16.mxu0 0
      %340 = vmatpush2.bf16.msra.mxu0 0
      %341 = vmatprep.subr.bf16.mxu0 0
      %342 = vmatpush2.bf16.msra.mxu0 0
      %343 = vmatprep.subr.bf16.mxu0 0
      %344 = vmatpush2.bf16.msra.mxu0 0
      %345 = vmatprep.subr.bf16.mxu0 0
      %346 = vmatpush2.bf16.msra.mxu0 0
      %347 = vmatprep.subr.bf16.mxu0 0
      %348 = vmatpush2.bf16.msra.mxu0 0
      %349 = vmatprep.subr.bf16.mxu0 0
      %350 = vmatpush2.bf16.msra.mxu0 0
      %351 = vmatprep.mubr.bf16.mxu0 0
      %352 = vmatmul.mubr.bf16.gmra.mxu0 %v317
      %v353 = vpop.f32.mrf.mxu0
      %v354 = vadd.f32 %v289, %v353
      %v355 = vpop.f32.mrf.mxu0
      %v356 = vpop.f32.mrf.mxu0
      %v357 = vadd.f32 %v289, %v356
      %v358 = vpop.f32.mrf.mxu0
      %359 = vdwg.mxu0
      %v360 = vld [vmem:[%s261] sm:$0xff]
      %v361 = vld [vmem:[%s261 + $0x8] sm:$0xff]
      %v362 = vld [vmem:[%s4] sm:$0x1]
      %v364 = vlaneseq
      %v365 = vshrl.u32 %v364, 7
      %v366 = vsub.s32 0, %v365
      %v367 = vrot.slane %v362, %v366
      %v369 = vmul.f32 %v360, %v367
      %v370 = vmul.f32 %v361, %v367
      %v371 = vld [vmem:[%s5] sm:$0x1]
      %v373 = vlaneseq
      %v374 = vshrl.u32 %v373, 7
      %v375 = vsub.s32 0, %v374
      %v376 = vrot.slane %v371, %v375
      %v378 = vadd.f32 %v369, %v376
      %v379 = vadd.f32 %v370, %v376
      %v380 = vadd.f32 %v378, %v354
      %v381 = vadd.f32 %v379, %v357
      %v382 = vmax.f32 %v380, 0.0
      %v383 = vmax.f32 %v381, 0.0
      %384 = vst [vmem:[%s271] sm:$0xff] %v382
      %385 = vst [vmem:[%s271 + $0x8] sm:$0xff] %v383
      %p386 = scmp.lt.s32.totalorder %s17, 1
      %s387 = scalar_select %p386, %s17, 1
      %s388 = smul.addr %s387, 2
      %s389 = smul.addr %s388, 8
      %s390 = scalar_lea.vmem %s6, %s389
      // Predicated region
      $region45: #{residual_forward.5} parent=43 // pred_check
        %p391 = pneg %p171
      $region46: #{residual_forward.5} parent=43 // pred_check_branch
        %393 = sbr.rel (%p391) target = $region48
      $region47: #{residual_forward.5} parent=43 // pred_region
        _
      $region48: #{residual_forward.5} parent=43 // pred_fallthru
        _
    $region44: #{residual_forward.5} parent=5 // pred_fallthru
      _
    %p394 = scmp.le.s32.totalorder 2, %s12
    // Predicated region
    $region49: #{residual_forward.5} parent=5 // pred_check
      %p395 = pneg %p394
    $region50: #{residual_forward.5} parent=5 // pred_check_branch
      %397 = sbr.rel (%p395) target = $region52
    $region51: #{residual_forward.5} parent=5 // pred_region
      %s398 = ssub.s32 %s12, 2
      // Predicated region
      $region53: #{residual_forward.5} parent=51 // pred_check
        %p399 = pneg %p177
      $region54: #{residual_forward.5} parent=51 // pred_check_branch
        %401 = sbr.rel (%p399) target = $region56
      $region55: #{residual_forward.5} parent=51 // pred_region
        %p402 = scmp.lt.s32.totalorder %s18, 1
        %s403 = scalar_select %p402, %s18, 1
        %s404 = smul.addr %s403, 2
        %s405 = smul.addr %s404, 8
        %s406 = scalar_lea.vmem %s6, %s405
      $region56: #{residual_forward.5} parent=51 // pred_fallthru
        _
    $region52: #{residual_forward.5} parent=5 // pred_fallthru
      _
  $region6: #{residual_forward.5} parent=0 // loop_footer
    %s16 = sadd.s32 1, %s12
  $region7: #{residual_forward.5} parent=0 // loop_footer_branch
    %11 = sbr.rel target = $region3
  $region8: #{residual_forward.5} parent=0 // loop_exit
    _

</llo_original>
